<compile_context>
chip_gen: v7x
topology: tpu7x:2x2x1
jax: 0.10.0
libtpu: 0.0.40
codegen_flags: <defaults>
</compile_context>

<pallas_src>
import functools
import math

import jax
import jax.numpy as jnp
from jax.experimental import pallas as pl
from jax.experimental.pallas import tpu as pltpu

LANE = 128
_FUSE_MAX_NODES = 2048          # n_pad^2 bf16 A <= 8 MiB -> resident-A fusion


def _round_up(x, m):
    return ((x + m - 1) // m) * m


def _pad2d(x, rows, cols):
    return jnp.pad(x, ((0, rows - x.shape[0]), (0, cols - x.shape[1])))


# --------------------------------------------------------------------------
# Fused path: all three layers in one pallas_call, A resident in VMEM (bf16).
# --------------------------------------------------------------------------
def _fused_gcn_kernel(a_ref, x_ref,
                      ws1_ref, wn1_ref, b1_ref,
                      ws2_ref, wn2_ref, b2_ref,
                      ws3_ref, wn3_ref, b3_ref,
                      out_ref):
    a = a_ref[...]                                    # bf16 [n_pad, n_pad]

    def layer(h_bf16, ws_ref, wn_ref, b_ref):
        # Neighbor aggregation + both projections on the bf16 MXU path,
        # f32 accumulation, f32 sigmoid.
        agg = jnp.dot(a, h_bf16, preferred_element_type=jnp.float32)
        self_t = jnp.dot(h_bf16, ws_ref[...],
                         preferred_element_type=jnp.float32)
        neigh_t = jnp.dot(agg.astype(jnp.bfloat16), wn_ref[...],
                          preferred_element_type=jnp.float32)
        return jax.nn.sigmoid(self_t + neigh_t + b_ref[...])

    h1 = layer(x_ref[...], ws1_ref, wn1_ref, b1_ref).astype(jnp.bfloat16)
    h2 = layer(h1, ws2_ref, wn2_ref, b2_ref).astype(jnp.bfloat16)
    h3 = layer(h2, ws3_ref, wn3_ref, b3_ref)
    out_ref[...] = h3.astype(out_ref.dtype)


def _fused_gcn(a_bf, x_bf, ws1, wn1, b1, ws2, wn2, b2, ws3, wn3, b3):
    n_pad, p_in = x_bf.shape
    p_hid = ws1.shape[1]
    p_emb = ws3.shape[1]

    dims = [(p_in, p_hid), (p_hid, p_hid), (p_hid, p_emb)]
    flops = sum(2 * n_pad * n_pad * fi + 2 * 2 * n_pad * fi * fo
                for fi, fo in dims)
    transcendentals = n_pad * (p_hid + p_hid + p_emb)
    weight_bytes = sum(int(w.size) * w.dtype.itemsize
                       for w in (ws1, wn1, b1, ws2, wn2, b2, ws3, wn3, b3))
    bytes_accessed = (int(a_bf.size) * 2 + int(x_bf.size) * 2 + weight_bytes
                      + n_pad * p_emb * 4)

    vmem_spec = pl.BlockSpec(memory_space=pltpu.MemorySpace.VMEM)
    return pl.pallas_call(
        _fused_gcn_kernel,
        out_shape=jax.ShapeDtypeStruct((n_pad, p_emb), jnp.float32),
        in_specs=[vmem_spec] * 11,
        out_specs=vmem_spec,
        compiler_params=pltpu.CompilerParams(
            vmem_limit_bytes=48 * 1024 * 1024),
        cost_estimate=pl.CostEstimate(
            flops=flops, transcendentals=transcendentals,
            bytes_accessed=bytes_accessed),
    )(a_bf, x_bf, ws1, wn1, b1, ws2, wn2, b2, ws3, wn3, b3)


# --------------------------------------------------------------------------
# Tiled streaming path (large graphs): per-layer kernel with k-reduction.
# --------------------------------------------------------------------------
def _sage_layer_kernel(a_ref, hk_ref, hi_ref, ws_ref, wn_ref, b_ref,
                       out_ref, acc_ref):
    """One (row-tile i, A-column-tile k) grid step of SAGEConv(mean)+sigmoid."""
    k = pl.program_id(1)

    @pl.when(k == 0)
    def _():
        acc_ref[...] = jnp.zeros_like(acc_ref)

    # Neighbor aggregation: bf16 x bf16 MXU matmul, f32 VMEM accumulator.
    acc_ref[...] += jnp.dot(a_ref[...], hk_ref[...],
                            preferred_element_type=jnp.float32)

    @pl.when(k == pl.num_programs(1) - 1)
    def _():
        self_t = jnp.dot(hi_ref[...], ws_ref[...],
                         preferred_element_type=jnp.float32)
        neigh_t = jnp.dot(acc_ref[...].astype(jnp.bfloat16), wn_ref[...],
                          preferred_element_type=jnp.float32)
        out_ref[...] = jax.nn.sigmoid(
            self_t + neigh_t + b_ref[...]).astype(out_ref.dtype)


def _sage_layer(a_bf, h_bf, w_self, w_neigh, bias, *, tm, tk, out_dtype):
    n_pad = a_bf.shape[0]
    f_in = h_bf.shape[1]
    f_out = w_self.shape[1]
    num_i, num_k = n_pad // tm, n_pad // tk

    flops = 2 * n_pad * n_pad * f_in + 2 * 2 * n_pad * f_in * f_out
    bytes_accessed = (int(a_bf.size) * 2                    # A read once (bf16)
                      + (num_i + 1) * int(h_bf.size) * 2    # h re-streamed per row tile
                      + (int(w_self.size) + int(w_neigh.size)) * 2
                      + int(bias.size) * 4
                      + n_pad * f_out * jnp.dtype(out_dtype).itemsize)

    return pl.pallas_call(
        _sage_layer_kernel,
        out_shape=jax.ShapeDtypeStruct((n_pad, f_out), out_dtype),
        grid=(num_i, num_k),
        in_specs=[
            pl.BlockSpec((tm, tk), lambda i, k: (i, k)),        # A tile (bf16)
            pl.BlockSpec((tk, f_in), lambda i, k: (k, 0)),      # h rows, aggregation
            pl.BlockSpec((tm, f_in), lambda i, k: (i, 0)),      # h rows, self term
            pl.BlockSpec((f_in, f_out), lambda i, k: (0, 0)),   # W_self  (resident)
            pl.BlockSpec((f_in, f_out), lambda i, k: (0, 0)),   # W_neigh (resident)
            pl.BlockSpec((1, f_out), lambda i, k: (0, 0)),      # bias    (resident)
        ],
        out_specs=pl.BlockSpec((tm, f_out), lambda i, k: (i, 0)),
        scratch_shapes=[pltpu.VMEM((tm, f_in), jnp.float32)],   # FIX: width f_in
        compiler_params=pltpu.CompilerParams(
            dimension_semantics=("parallel", "arbitrary"),
            vmem_limit_bytes=48 * 1024 * 1024),
        cost_estimate=pl.CostEstimate(
            flops=flops,
            transcendentals=n_pad * f_out,
            bytes_accessed=bytes_accessed),
    )(a_bf, h_bf, h_bf, w_self, w_neigh, bias)


# --------------------------------------------------------------------------
# Forward
# --------------------------------------------------------------------------
@functools.partial(jax.jit, static_argnames=("fused", "tm", "tk"))
def gcn_forward(a_norm, x, params, *, fused=None, tm=None, tk=None):
    n, f_in = x.shape
    hid = params["w_self1"].shape[1]
    emb = params["w_self3"].shape[1]

    p_in = _round_up(f_in, LANE)
    p_hid = _round_up(hid, LANE)
    p_emb = _round_up(emb, LANE)

    if fused is None:
        fused = _round_up(n, LANE) <= _FUSE_MAX_NODES

    if fused:
        n_pad = _round_up(n, LANE)
    else:
        if tm is None or tk is None:
            # Large-tile streaming defaults: tk a multiple of tm so the square
            # A padding stays bounded (< 512 extra rows).
            n_pad = _round_up(n, 512)
            tm = 256
            tk = max(t for t in (4096, 2048, 1024, 512)
                     if t <= n_pad and n_pad % t == 0)
        else:
            n_pad = _round_up(n, math.lcm(tm, tk))

    # Zero-padded operands: padded A rows/cols are zero and padded weight rows
    # / bias cols are zero, so padded nodes and padded feature columns never
    # contaminate real outputs (padded columns of intermediate activations are
    # sigmoid(0)=0.5 but are killed by the zero weight rows downstream).
    a_bf = _pad2d(a_norm, n_pad, n_pad).astype(jnp.bfloat16)
    h = _pad2d(x, n_pad, p_in).astype(jnp.bfloat16)

    ws1 = _pad2d(params["w_self1"], p_in, p_hid).astype(jnp.bfloat16)
    wn1 = _pad2d(params["w_neigh1"], p_in, p_hid).astype(jnp.bfloat16)
    b1 = _pad2d(params["b1"], 1, p_hid)
    ws2 = _pad2d(params["w_self2"], p_hid, p_hid).astype(jnp.bfloat16)
    wn2 = _pad2d(params["w_neigh2"], p_hid, p_hid).astype(jnp.bfloat16)
    b2 = _pad2d(params["b2"], 1, p_hid)
    ws3 = _pad2d(params["w_self3"], p_hid, p_emb).astype(jnp.bfloat16)
    wn3 = _pad2d(params["w_neigh3"], p_hid, p_emb).astype(jnp.bfloat16)
    b3 = _pad2d(params["b3"], 1, p_emb)

    if fused:
        out = _fused_gcn(a_bf, h, ws1, wn1, b1, ws2, wn2, b2, ws3, wn3, b3)
    else:
        h = _sage_layer(a_bf, h, ws1, wn1, b1, tm=tm, tk=tk,
                        out_dtype=jnp.bfloat16)
        h = _sage_layer(a_bf, h, ws2, wn2, b2, tm=tm, tk=tk,
                        out_dtype=jnp.bfloat16)
        out = _sage_layer(a_bf, h, ws3, wn3, b3, tm=tm, tk=tk,
                          out_dtype=jnp.float32)
    return out[:n, :emb]


def reference_forward(a_norm, x, params):
    """Pure-JAX f32 reference (dense SAGEConv-mean GCN)."""
    def layer(h, ws, wn, b):
        return jax.nn.sigmoid(h @ ws + (a_norm @ h) @ wn + b)
    h = layer(x, params["w_self1"], params["w_neigh1"], params["b1"])
    h = layer(h, params["w_self2"], params["w_neigh2"], params["b2"])
    h = layer(h, params["w_self3"], params["w_neigh3"], params["b3"])
    return h


def init_params(key, features=5, hidden=5, embedding=1):
    """Deterministic synthetic weights. PyTorch Linear weight is [out, in];
    pre-transposed to [in, out] so the kernel computes feat @ W directly."""
    ks = jax.random.split(key, 9)

    def lin(k, fin, fout):
        return (jax.random.normal(k, (fout, fin), jnp.float32) * 0.3).T

    return {
        "w_self1": lin(ks[0], features, hidden),
        "w_neigh1": lin(ks[1], features, hidden),
        "b1": jax.random.normal(ks[2], (1, hidden), jnp.float32) * 0.1,
        "w_self2": lin(ks[3], hidden, hidden),
        "w_neigh2": lin(ks[4], hidden, hidden),
        "b2": jax.random.normal(ks[5], (1, hidden), jnp.float32) * 0.1,
        "w_self3": lin(ks[6], hidden, embedding),
        "w_neigh3": lin(ks[7], hidden, embedding),
        "b3": jax.random.normal(ks[8], (1, embedding), jnp.float32) * 0.1,
    }


if __name__ == "__main__":
    key = jax.random.PRNGKey(0)
    k_graph, k_feat, k_param = jax.random.split(key, 3)

    N, FEATURES, HIDDEN, EMB = 256, 5, 5, 1

    # Deterministic random directed graph -> dense adjacency (A[i,j]=1 iff j->i).
    adj = jax.random.bernoulli(k_graph, p=0.05, shape=(N, N)).astype(jnp.float32)
    adj = adj * (1.0 - jnp.eye(N, dtype=jnp.float32))     # no self loops
    in_deg = jnp.sum(adj, axis=1, keepdims=True)
    a_norm = adj / jnp.maximum(in_deg, 1.0)                # mean aggregator; 0-deg rows -> 0

    x = jax.random.normal(k_feat, (N, FEATURES), jnp.float32)
    params = init_params(k_param, FEATURES, HIDDEN, EMB)

    ref = reference_forward(a_norm, x, params)

    # Fused path (default at this size): A resident in VMEM, one pallas_call.
    out_fused = jax.block_until_ready(gcn_forward(a_norm, x, params))
    assert out_fused.shape == (N, EMB) and out_fused.dtype == jnp.float32
    err_fused = float(jnp.max(jnp.abs(out_fused - ref)))
    assert err_fused < 3e-2, err_fused

    # Tiled streaming path, exercised with small tiles so the k-reduction
    # (accumulator init / accumulate / finalize) is actually run; production
    # defaults for large graphs use tm=256, tk>=512.
    out_tiled = jax.block_until_ready(
        gcn_forward(a_norm, x, params, fused=False, tm=128, tk=128))
    assert out_tiled.shape == (N, EMB) and out_tiled.dtype == jnp.float32
    err_tiled = float(jnp.max(jnp.abs(out_tiled - ref)))
    assert err_tiled < 3e-2, err_tiled

    print("KERNEL_OK")
</pallas_src>

<mosaic_0001>
module attributes {stable_mosaic.version = 11 : i64} {
  func.func @_fused_gcn_kernel(%arg0: memref<256x256xbf16, #tpu.memory_space<vmem>>, %arg1: memref<256x128xbf16, #tpu.memory_space<vmem>>, %arg2: memref<128x128xbf16, #tpu.memory_space<vmem>>, %arg3: memref<128x128xbf16, #tpu.memory_space<vmem>>, %arg4: memref<1x128xf32, #tpu.memory_space<vmem>>, %arg5: memref<128x128xbf16, #tpu.memory_space<vmem>>, %arg6: memref<128x128xbf16, #tpu.memory_space<vmem>>, %arg7: memref<1x128xf32, #tpu.memory_space<vmem>>, %arg8: memref<128x128xbf16, #tpu.memory_space<vmem>>, %arg9: memref<128x128xbf16, #tpu.memory_space<vmem>>, %arg10: memref<1x128xf32, #tpu.memory_space<vmem>>, %arg11: memref<256x128xf32, #tpu.memory_space<vmem>>) attributes {dimension_semantics = [], scalar_prefetch = 0 : i64, scratch_operands = 0 : i64, tpu.core_type = #tpu.core_type<tc>} {
    %c0 = arith.constant 0 : index
    %c0_0 = arith.constant 0 : index
    %0 = vector.load %arg0[%c0, %c0_0] : memref<256x256xbf16, #tpu.memory_space<vmem>>, vector<256x256xbf16>
    %c0_1 = arith.constant 0 : index
    %c0_2 = arith.constant 0 : index
    %1 = vector.load %arg1[%c0_1, %c0_2] : memref<256x128xbf16, #tpu.memory_space<vmem>>, vector<256x128xbf16>
    %cst = arith.constant dense<0.000000e+00> : vector<256x128xf32>
    %2 = tpu.matmul %0, %1, %cst {dimension_numbers = #tpu.dot_dimension_numbers<[1], [0], [0], [1], [0, 0, 1, 1], [], []>} : vector<256x256xbf16>, vector<256x128xbf16>, vector<256x128xf32> -> vector<256x128xf32>
    %c0_3 = arith.constant 0 : index
    %c0_4 = arith.constant 0 : index
    %3 = vector.load %arg2[%c0_3, %c0_4] : memref<128x128xbf16, #tpu.memory_space<vmem>>, vector<128x128xbf16>
    %cst_5 = arith.constant dense<0.000000e+00> : vector<256x128xf32>
    %4 = tpu.matmul %1, %3, %cst_5 {dimension_numbers = #tpu.dot_dimension_numbers<[1], [0], [0], [1], [0, 0, 1, 1], [], []>} : vector<256x128xbf16>, vector<128x128xbf16>, vector<256x128xf32> -> vector<256x128xf32>
    %5 = arith.truncf %2 : vector<256x128xf32> to vector<256x128xbf16>
    %c0_6 = arith.constant 0 : index
    %c0_7 = arith.constant 0 : index
    %6 = vector.load %arg3[%c0_6, %c0_7] : memref<128x128xbf16, #tpu.memory_space<vmem>>, vector<128x128xbf16>
    %cst_8 = arith.constant dense<0.000000e+00> : vector<256x128xf32>
    %7 = tpu.matmul %5, %6, %cst_8 {dimension_numbers = #tpu.dot_dimension_numbers<[1], [0], [0], [1], [0, 0, 1, 1], [], []>} : vector<256x128xbf16>, vector<128x128xbf16>, vector<256x128xf32> -> vector<256x128xf32>
    %8 = arith.addf %4, %7 : vector<256x128xf32>
    %c0_9 = arith.constant 0 : index
    %c0_10 = arith.constant 0 : index
    %9 = vector.load %arg4[%c0_9, %c0_10] : memref<1x128xf32, #tpu.memory_space<vmem>>, vector<1x128xf32>
    %10 = vector.broadcast %9 : vector<1x128xf32> to vector<256x128xf32>
    %11 = arith.addf %8, %10 : vector<256x128xf32>
    %12 = arith.negf %11 : vector<256x128xf32>
    %13 = math.exp %12 : vector<256x128xf32>
    %cst_11 = arith.constant 1.000000e+00 : f32
    %14 = vector.broadcast %cst_11 : f32 to vector<256x128xf32>
    %15 = arith.addf %14, %13 : vector<256x128xf32>
    %16 = arith.divf %14, %15 : vector<256x128xf32>
    %17 = arith.truncf %16 : vector<256x128xf32> to vector<256x128xbf16>
    %cst_12 = arith.constant dense<0.000000e+00> : vector<256x128xf32>
    %18 = tpu.matmul %0, %17, %cst_12 {dimension_numbers = #tpu.dot_dimension_numbers<[1], [0], [0], [1], [0, 0, 1, 1], [], []>} : vector<256x256xbf16>, vector<256x128xbf16>, vector<256x128xf32> -> vector<256x128xf32>
    %c0_13 = arith.constant 0 : index
    %c0_14 = arith.constant 0 : index
    %19 = vector.load %arg5[%c0_13, %c0_14] : memref<128x128xbf16, #tpu.memory_space<vmem>>, vector<128x128xbf16>
    %cst_15 = arith.constant dense<0.000000e+00> : vector<256x128xf32>
    %20 = tpu.matmul %17, %19, %cst_15 {dimension_numbers = #tpu.dot_dimension_numbers<[1], [0], [0], [1], [0, 0, 1, 1], [], []>} : vector<256x128xbf16>, vector<128x128xbf16>, vector<256x128xf32> -> vector<256x128xf32>
    %21 = arith.truncf %18 : vector<256x128xf32> to vector<256x128xbf16>
    %c0_16 = arith.constant 0 : index
    %c0_17 = arith.constant 0 : index
    %22 = vector.load %arg6[%c0_16, %c0_17] : memref<128x128xbf16, #tpu.memory_space<vmem>>, vector<128x128xbf16>
    %cst_18 = arith.constant dense<0.000000e+00> : vector<256x128xf32>
    %23 = tpu.matmul %21, %22, %cst_18 {dimension_numbers = #tpu.dot_dimension_numbers<[1], [0], [0], [1], [0, 0, 1, 1], [], []>} : vector<256x128xbf16>, vector<128x128xbf16>, vector<256x128xf32> -> vector<256x128xf32>
    %24 = arith.addf %20, %23 : vector<256x128xf32>
    %c0_19 = arith.constant 0 : index
    %c0_20 = arith.constant 0 : index
    %25 = vector.load %arg7[%c0_19, %c0_20] : memref<1x128xf32, #tpu.memory_space<vmem>>, vector<1x128xf32>
    %26 = vector.broadcast %25 : vector<1x128xf32> to vector<256x128xf32>
    %27 = arith.addf %24, %26 : vector<256x128xf32>
    %28 = arith.negf %27 : vector<256x128xf32>
    %29 = math.exp %28 : vector<256x128xf32>
    %cst_21 = arith.constant 1.000000e+00 : f32
    %30 = vector.broadcast %cst_21 : f32 to vector<256x128xf32>
    %31 = arith.addf %30, %29 : vector<256x128xf32>
    %32 = arith.divf %30, %31 : vector<256x128xf32>
    %33 = arith.truncf %32 : vector<256x128xf32> to vector<256x128xbf16>
    %cst_22 = arith.constant dense<0.000000e+00> : vector<256x128xf32>
    %34 = tpu.matmul %0, %33, %cst_22 {dimension_numbers = #tpu.dot_dimension_numbers<[1], [0], [0], [1], [0, 0, 1, 1], [], []>} : vector<256x256xbf16>, vector<256x128xbf16>, vector<256x128xf32> -> vector<256x128xf32>
    %c0_23 = arith.constant 0 : index
    %c0_24 = arith.constant 0 : index
    %35 = vector.load %arg8[%c0_23, %c0_24] : memref<128x128xbf16, #tpu.memory_space<vmem>>, vector<128x128xbf16>
    %cst_25 = arith.constant dense<0.000000e+00> : vector<256x128xf32>
    %36 = tpu.matmul %33, %35, %cst_25 {dimension_numbers = #tpu.dot_dimension_numbers<[1], [0], [0], [1], [0, 0, 1, 1], [], []>} : vector<256x128xbf16>, vector<128x128xbf16>, vector<256x128xf32> -> vector<256x128xf32>
    %37 = arith.truncf %34 : vector<256x128xf32> to vector<256x128xbf16>
    %c0_26 = arith.constant 0 : index
    %c0_27 = arith.constant 0 : index
    %38 = vector.load %arg9[%c0_26, %c0_27] : memref<128x128xbf16, #tpu.memory_space<vmem>>, vector<128x128xbf16>
    %cst_28 = arith.constant dense<0.000000e+00> : vector<256x128xf32>
    %39 = tpu.matmul %37, %38, %cst_28 {dimension_numbers = #tpu.dot_dimension_numbers<[1], [0], [0], [1], [0, 0, 1, 1], [], []>} : vector<256x128xbf16>, vector<128x128xbf16>, vector<256x128xf32> -> vector<256x128xf32>
    %40 = arith.addf %36, %39 : vector<256x128xf32>
    %c0_29 = arith.constant 0 : index
    %c0_30 = arith.constant 0 : index
    %41 = vector.load %arg10[%c0_29, %c0_30] : memref<1x128xf32, #tpu.memory_space<vmem>>, vector<1x128xf32>
    %42 = vector.broadcast %41 : vector<1x128xf32> to vector<256x128xf32>
    %43 = arith.addf %40, %42 : vector<256x128xf32>
    %44 = arith.negf %43 : vector<256x128xf32>
    %45 = math.exp %44 : vector<256x128xf32>
    %cst_31 = arith.constant 1.000000e+00 : f32
    %46 = vector.broadcast %cst_31 : f32 to vector<256x128xf32>
    %47 = arith.addf %46, %45 : vector<256x128xf32>
    %48 = arith.divf %46, %47 : vector<256x128xf32>
    %c0_32 = arith.constant 0 : index
    %c0_33 = arith.constant 0 : index
    %49 = vector.load %arg11[%c0_32, %c0_33] : memref<256x128xf32, #tpu.memory_space<vmem>>, vector<256x128xf32>
    tpu.vector_store %arg11[%c0_32, %c0_33], %48 {strides = array<i32>} : memref<256x128xf32, #tpu.memory_space<vmem>>, vector<256x128xf32>,
    return
  }
}

</mosaic_0001>

<llo_original>
// kernel: gcn_forward.1
$region0: #{gcn_forward.1}
  #allocation0 [shape = 'u32[]', space=smem, size = 0x4, offset = 0x4, fixed_abs, tag = 'smem constant byte address 0x4 - core index']
  #allocation1 [shape = 'u32[144,128]{1,0:T(1,128)}', space=vmem, size = 0x12000, scoped, tag = 'internal scratch']
  %s0 = inlined_call_operand.vmem [shape: bf16[256,256], index: 0, kind: input, shape index: {}]
  %s1 = inlined_call_operand.vmem [shape: bf16[256,128], index: 1, kind: input, shape index: {}]
  %s2 = inlined_call_operand.vmem [shape: bf16[128,128], index: 2, kind: input, shape index: {}]
  %s3 = inlined_call_operand.vmem [shape: bf16[128,128], index: 3, kind: input, shape index: {}]
  %s4 = inlined_call_operand.vmem [shape: f32[1,128], index: 4, kind: input, shape index: {}]
  %s5 = inlined_call_operand.vmem [shape: bf16[128,128], index: 5, kind: input, shape index: {}]
  %s6 = inlined_call_operand.vmem [shape: bf16[128,128], index: 6, kind: input, shape index: {}]
  %s7 = inlined_call_operand.vmem [shape: f32[1,128], index: 7, kind: input, shape index: {}]
  %s8 = inlined_call_operand.vmem [shape: bf16[128,128], index: 8, kind: input, shape index: {}]
  %s9 = inlined_call_operand.vmem [shape: bf16[128,128], index: 9, kind: input, shape index: {}]
  %s10 = inlined_call_operand.vmem [shape: f32[1,128], index: 10, kind: input, shape index: {}]
  %s11 = inlined_call_operand.vmem [shape: f32[256,128], index: 11, kind: output, shape index: {}]
  %s12 = sld [smem:[#allocation0]]
  $region54: #{gcn_forward.1} parent=0
    _
  %s14 = ssub.s32 1, %s12
  %s15 = scalar_select 0, %s14, %s12
  // Predicated region
  $region2: #{gcn_forward.1} parent=0 // pred_check
    _
  $region3: #{gcn_forward.1} parent=0 // pred_check_branch
    %17 = sbr.rel (0) target = $region5
  $region4: #{gcn_forward.1} parent=0 // pred_region
    _
  $region5: #{gcn_forward.1} parent=0 // pred_fallthru
    _
  // Predicated region
  $region6: #{gcn_forward.1} parent=0 // pred_check
    _
  $region7: #{gcn_forward.1} parent=0 // pred_check_branch
    %19 = sbr.rel (0) target = $region9
  $region8: #{gcn_forward.1} parent=0 // pred_region
    _
  $region9: #{gcn_forward.1} parent=0 // pred_fallthru
    _
  // Predicated region
  $region10: #{gcn_forward.1} parent=0 // pred_check
    _
  $region11: #{gcn_forward.1} parent=0 // pred_check_branch
    %21 = sbr.rel (0) target = $region13
  $region12: #{gcn_forward.1} parent=0 // pred_region
    _
  $region13: #{gcn_forward.1} parent=0 // pred_fallthru
    _
  // Predicated region
  $region14: #{gcn_forward.1} parent=0 // pred_check
    _
  $region15: #{gcn_forward.1} parent=0 // pred_check_branch
    %23 = sbr.rel (0) target = $region17
  $region16: #{gcn_forward.1} parent=0 // pred_region
    _
  $region17: #{gcn_forward.1} parent=0 // pred_fallthru
    _
  // Predicated region
  $region18: #{gcn_forward.1} parent=0 // pred_check
    _
  $region19: #{gcn_forward.1} parent=0 // pred_check_branch
    %25 = sbr.rel (0) target = $region21
  $region20: #{gcn_forward.1} parent=0 // pred_region
    _
  $region21: #{gcn_forward.1} parent=0 // pred_fallthru
    _
  // Predicated region
  $region22: #{gcn_forward.1} parent=0 // pred_check
    _
  $region23: #{gcn_forward.1} parent=0 // pred_check_branch
    %27 = sbr.rel (0) target = $region25
  $region24: #{gcn_forward.1} parent=0 // pred_region
    _
  $region25: #{gcn_forward.1} parent=0 // pred_fallthru
    _
  // Predicated region
  $region26: #{gcn_forward.1} parent=0 // pred_check
    _
  $region27: #{gcn_forward.1} parent=0 // pred_check_branch
    %29 = sbr.rel (0) target = $region29
  $region28: #{gcn_forward.1} parent=0 // pred_region
    _
  $region29: #{gcn_forward.1} parent=0 // pred_fallthru
    _
  // Predicated region
  $region30: #{gcn_forward.1} parent=0 // pred_check
    _
  $region31: #{gcn_forward.1} parent=0 // pred_check_branch
    %31 = sbr.rel (0) target = $region33
  $region32: #{gcn_forward.1} parent=0 // pred_region
    _
  $region33: #{gcn_forward.1} parent=0 // pred_fallthru
    _
  // Predicated region
  $region34: #{gcn_forward.1} parent=0 // pred_check
    _
  $region35: #{gcn_forward.1} parent=0 // pred_check_branch
    %33 = sbr.rel (0) target = $region37
  $region36: #{gcn_forward.1} parent=0 // pred_region
    _
  $region37: #{gcn_forward.1} parent=0 // pred_fallthru
    _
  // Predicated region
  $region38: #{gcn_forward.1} parent=0 // pred_check
    _
  $region39: #{gcn_forward.1} parent=0 // pred_check_branch
    %35 = sbr.rel (0) target = $region41
  $region40: #{gcn_forward.1} parent=0 // pred_region
    _
  $region41: #{gcn_forward.1} parent=0 // pred_fallthru
    _
  // Predicated region
  $region42: #{gcn_forward.1} parent=0 // pred_check
    _
  $region43: #{gcn_forward.1} parent=0 // pred_check_branch
    %37 = sbr.rel (0) target = $region45
  $region44: #{gcn_forward.1} parent=0 // pred_region
    _
  $region45: #{gcn_forward.1} parent=0 // pred_fallthru
    _
  %v39 = vld [vmem:[%s0] sm:$0xff]
  %v40 = vld [vmem:[%s0 + $0x8] sm:$0xff]
  %v41 = vld [vmem:[%s0 + $0x10] sm:$0xff]
  %v42 = vld [vmem:[%s0 + $0x18] sm:$0xff]
  %v43 = vld [vmem:[%s0 + $0x20] sm:$0xff]
  %v44 = vld [vmem:[%s0 + $0x28] sm:$0xff]
  %v45 = vld [vmem:[%s0 + $0x30] sm:$0xff]
  %v46 = vld [vmem:[%s0 + $0x38] sm:$0xff]
  %v47 = vld [vmem:[%s0 + $0x40] sm:$0xff]
  %v48 = vld [vmem:[%s0 + $0x48] sm:$0xff]
  %v49 = vld [vmem:[%s0 + $0x50] sm:$0xff]
  %v50 = vld [vmem:[%s0 + $0x58] sm:$0xff]
  %v51 = vld [vmem:[%s0 + $0x60] sm:$0xff]
  %v52 = vld [vmem:[%s0 + $0x68] sm:$0xff]
  %v53 = vld [vmem:[%s0 + $0x70] sm:$0xff]
  %v54 = vld [vmem:[%s0 + $0x78] sm:$0xff]
  %v55 = vld [vmem:[%s0 + $0x80] sm:$0xff]
  %v56 = vld [vmem:[%s0 + $0x88] sm:$0xff]
  %v57 = vld [vmem:[%s0 + $0x90] sm:$0xff]
  %v58 = vld [vmem:[%s0 + $0x98] sm:$0xff]
  %v59 = vld [vmem:[%s0 + $0xa0] sm:$0xff]
  %v60 = vld [vmem:[%s0 + $0xa8] sm:$0xff]
  %v61 = vld [vmem:[%s0 + $0xb0] sm:$0xff]
  %v62 = vld [vmem:[%s0 + $0xb8] sm:$0xff]
  %v63 = vld [vmem:[%s0 + $0xc0] sm:$0xff]
  %v64 = vld [vmem:[%s0 + $0xc8] sm:$0xff]
  %v65 = vld [vmem:[%s0 + $0xd0] sm:$0xff]
  %v66 = vld [vmem:[%s0 + $0xd8] sm:$0xff]
  %v67 = vld [vmem:[%s0 + $0xe0] sm:$0xff]
  %v68 = vld [vmem:[%s0 + $0xe8] sm:$0xff]
  %v69 = vld [vmem:[%s0 + $0xf0] sm:$0xff]
  %v70 = vld [vmem:[%s0 + $0xf8] sm:$0xff]
  %v71 = vld [vmem:[%s1] sm:$0xf]
  %v72 = vld [vmem:[%s1 + $0x4] sm:$0xf]
  %v73 = vld [vmem:[%s1 + $0x8] sm:$0xf]
  %v74 = vld [vmem:[%s1 + $0xc] sm:$0xf]
  %v75 = vld [vmem:[%s1 + $0x10] sm:$0xf]
  %v76 = vld [vmem:[%s1 + $0x14] sm:$0xf]
  %v77 = vld [vmem:[%s1 + $0x18] sm:$0xf]
  %v78 = vld [vmem:[%s1 + $0x1c] sm:$0xf]
  %v79 = vld [vmem:[%s1 + $0x20] sm:$0xf]
  %v80 = vld [vmem:[%s1 + $0x24] sm:$0xf]
  %v81 = vld [vmem:[%s1 + $0x28] sm:$0xf]
  %v82 = vld [vmem:[%s1 + $0x2c] sm:$0xf]
  %v83 = vld [vmem:[%s1 + $0x30] sm:$0xf]
  %v84 = vld [vmem:[%s1 + $0x34] sm:$0xf]
  %v85 = vld [vmem:[%s1 + $0x38] sm:$0xf]
  %v86 = vld [vmem:[%s1 + $0x3c] sm:$0xf]
  %v87 = vld [vmem:[%s1 + $0x40] sm:$0xf]
  %v88 = vld [vmem:[%s1 + $0x44] sm:$0xf]
  %v89 = vld [vmem:[%s1 + $0x48] sm:$0xf]
  %v90 = vld [vmem:[%s1 + $0x4c] sm:$0xf]
  %v91 = vld [vmem:[%s1 + $0x50] sm:$0xf]
  %v92 = vld [vmem:[%s1 + $0x54] sm:$0xf]
  %v93 = vld [vmem:[%s1 + $0x58] sm:$0xf]
  %v94 = vld [vmem:[%s1 + $0x5c] sm:$0xf]
  %v95 = vld [vmem:[%s1 + $0x60] sm:$0xf]
  %v96 = vld [vmem:[%s1 + $0x64] sm:$0xf]
  %v97 = vld [vmem:[%s1 + $0x68] sm:$0xf]
  %v98 = vld [vmem:[%s1 + $0x6c] sm:$0xf]
  %v99 = vld [vmem:[%s1 + $0x70] sm:$0xf]
  %v100 = vld [vmem:[%s1 + $0x74] sm:$0xf]
  %v101 = vld [vmem:[%s1 + $0x78] sm:$0xf]
  %v102 = vld [vmem:[%s1 + $0x7c] sm:$0xf]
  %v135 = vunpack.c.l.b16 %v39
  %v136 = vunpack.c.h.b16 %v39
  %v137 = vunpack.c.l.b16 %v40
  %v138 = vunpack.c.h.b16 %v40
  %v139 = vunpack.c.l.b16 %v41
  %v140 = vunpack.c.h.b16 %v41
  %v141 = vunpack.c.l.b16 %v42
  %v142 = vunpack.c.h.b16 %v42
  %v143 = vunpack.c.l.b16 %v43
  %v144 = vunpack.c.h.b16 %v43
  %v145 = vunpack.c.l.b16 %v44
  %v146 = vunpack.c.h.b16 %v44
  %v147 = vunpack.c.l.b16 %v45
  %v148 = vunpack.c.h.b16 %v45
  %v149 = vunpack.c.l.b16 %v46
  %v150 = vunpack.c.h.b16 %v46
  %v151 = vunpack.c.l.b16 %v47
  %v152 = vunpack.c.h.b16 %v47
  %v153 = vunpack.c.l.b16 %v48
  %v154 = vunpack.c.h.b16 %v48
  %v155 = vunpack.c.l.b16 %v49
  %v156 = vunpack.c.h.b16 %v49
  %v157 = vunpack.c.l.b16 %v50
  %v158 = vunpack.c.h.b16 %v50
  %v159 = vunpack.c.l.b16 %v51
  %v160 = vunpack.c.h.b16 %v51
  %v161 = vunpack.c.l.b16 %v52
  %v162 = vunpack.c.h.b16 %v52
  %v163 = vunpack.c.l.b16 %v53
  %v164 = vunpack.c.h.b16 %v53
  %v165 = vunpack.c.l.b16 %v54
  %v166 = vunpack.c.h.b16 %v54
  %v167 = vunpack.c.l.b16 %v55
  %v168 = vunpack.c.h.b16 %v55
  %v169 = vunpack.c.l.b16 %v56
  %v170 = vunpack.c.h.b16 %v56
  %v171 = vunpack.c.l.b16 %v57
  %v172 = vunpack.c.h.b16 %v57
  %v173 = vunpack.c.l.b16 %v58
  %v174 = vunpack.c.h.b16 %v58
  %v175 = vunpack.c.l.b16 %v59
  %v176 = vunpack.c.h.b16 %v59
  %v177 = vunpack.c.l.b16 %v60
  %v178 = vunpack.c.h.b16 %v60
  %v179 = vunpack.c.l.b16 %v61
  %v180 = vunpack.c.h.b16 %v61
  %v181 = vunpack.c.l.b16 %v62
  %v182 = vunpack.c.h.b16 %v62
  %v183 = vunpack.c.l.b16 %v63
  %v184 = vunpack.c.h.b16 %v63
  %v185 = vunpack.c.l.b16 %v64
  %v186 = vunpack.c.h.b16 %v64
  %v187 = vunpack.c.l.b16 %v65
  %v188 = vunpack.c.h.b16 %v65
  %v189 = vunpack.c.l.b16 %v66
  %v190 = vunpack.c.h.b16 %v66
  %v191 = vunpack.c.l.b16 %v67
  %v192 = vunpack.c.h.b16 %v67
  %v193 = vunpack.c.l.b16 %v68
  %v194 = vunpack.c.h.b16 %v68
  %v195 = vunpack.c.l.b16 %v69
  %v196 = vunpack.c.h.b16 %v69
  %v197 = vunpack.c.l.b16 %v70
  %v198 = vunpack.c.h.b16 %v70
  %v199 = vpack.c.b16 %v137, %v135
  %v200 = vpack.c.b16 %v138, %v136
  %v201 = vpack.c.b16 %v141, %v139
  %v202 = vpack.c.b16 %v142, %v140
  %v203 = vpack.c.b16 %v145, %v143
  %v204 = vpack.c.b16 %v146, %v144
  %v205 = vpack.c.b16 %v149, %v147
  %v206 = vpack.c.b16 %v150, %v148
  %v207 = vpack.c.b16 %v153, %v151
  %v208 = vpack.c.b16 %v154, %v152
  %v209 = vpack.c.b16 %v157, %v155
  %v210 = vpack.c.b16 %v158, %v156
  %v211 = vpack.c.b16 %v161, %v159
  %v212 = vpack.c.b16 %v162, %v160
  %v213 = vpack.c.b16 %v165, %v163
  %v214 = vpack.c.b16 %v166, %v164
  %v215 = vpack.c.b16 %v169, %v167
  %v216 = vpack.c.b16 %v170, %v168
  %v217 = vpack.c.b16 %v173, %v171
  %v218 = vpack.c.b16 %v174, %v172
  %v219 = vpack.c.b16 %v177, %v175
  %v220 = vpack.c.b16 %v178, %v176
  %v221 = vpack.c.b16 %v181, %v179
  %v222 = vpack.c.b16 %v182, %v180
  %v223 = vpack.c.b16 %v185, %v183
  %v224 = vpack.c.b16 %v186, %v184
  %v225 = vpack.c.b16 %v189, %v187
  %v226 = vpack.c.b16 %v190, %v188
  %v227 = vpack.c.b16 %v193, %v191
  %v228 = vpack.c.b16 %v194, %v192
  %v229 = vpack.c.b16 %v197, %v195
  %v230 = vpack.c.b16 %v198, %v196
  %v295 = vunpack.c.l.b16 %v71
  %v296 = vunpack.c.l.b16 %v72
  %v297 = vunpack.c.l.b16 %v73
  %v298 = vunpack.c.l.b16 %v74
  %v299 = vunpack.c.l.b16 %v75
  %v300 = vunpack.c.l.b16 %v76
  %v301 = vunpack.c.l.b16 %v77
  %v302 = vunpack.c.l.b16 %v78
  %v303 = vunpack.c.l.b16 %v79
  %v304 = vunpack.c.l.b16 %v80
  %v305 = vunpack.c.l.b16 %v81
  %v306 = vunpack.c.l.b16 %v82
  %v307 = vunpack.c.l.b16 %v83
  %v308 = vunpack.c.l.b16 %v84
  %v309 = vunpack.c.l.b16 %v85
  %v310 = vunpack.c.l.b16 %v86
  %v311 = vunpack.c.l.b16 %v87
  %v312 = vunpack.c.l.b16 %v88
  %v313 = vunpack.c.l.b16 %v89
  %v314 = vunpack.c.l.b16 %v90
  %v315 = vunpack.c.l.b16 %v91
  %v316 = vunpack.c.l.b16 %v92
  %v317 = vunpack.c.l.b16 %v93
  %v318 = vunpack.c.l.b16 %v94
  %v319 = vunpack.c.l.b16 %v95
  %v320 = vunpack.c.l.b16 %v96
  %v321 = vunpack.c.l.b16 %v97
  %v322 = vunpack.c.l.b16 %v98
  %v323 = vunpack.c.l.b16 %v99
  %v324 = vunpack.c.l.b16 %v100
  %v325 = vunpack.c.l.b16 %v101
  %v326 = vunpack.c.l.b16 %v102
  %v327 = vpack.c.b16 %v296, %v295
  %v328 = vpack.c.b16 %v298, %v297
  %v329 = vpack.c.b16 %v300, %v299
  %v330 = vpack.c.b16 %v302, %v301
  %v331 = vpack.c.b16 %v304, %v303
  %v332 = vpack.c.b16 %v306, %v305
  %v333 = vpack.c.b16 %v308, %v307
  %v334 = vpack.c.b16 %v310, %v309
  %v335 = vpack.c.b16 %v312, %v311
  %v336 = vpack.c.b16 %v314, %v313
  %v337 = vpack.c.b16 %v316, %v315
  %v338 = vpack.c.b16 %v318, %v317
  %v339 = vpack.c.b16 %v320, %v319
  %v340 = vpack.c.b16 %v322, %v321
  %v341 = vpack.c.b16 %v324, %v323
  %v342 = vpack.c.b16 %v326, %v325
  %359 = vmatprep.subr.bf16.mxu0 0
  %360 = vmatpush1.bf16.msra.mxu0 %v327
  %361 = vmatprep.subr.bf16.mxu0 0
  %362 = vmatpush1.bf16.msra.mxu0 %v328
  %363 = vmatprep.subr.bf16.mxu0 0
  %364 = vmatpush1.bf16.msra.mxu0 %v329
  %365 = vmatprep.subr.bf16.mxu0 0
  %366 = vmatpush1.bf16.msra.mxu0 %v330
  %367 = vmatprep.subr.bf16.mxu0 0
  %368 = vmatpush1.bf16.msra.mxu0 %v331
  %369 = vmatprep.subr.bf16.mxu0 0
  %370 = vmatpush1.bf16.msra.mxu0 %v332
  %371 = vmatprep.subr.bf16.mxu0 0
  %372 = vmatpush1.bf16.msra.mxu0 %v333
  %373 = vmatprep.subr.bf16.mxu0 0
  %374 = vmatpush1.bf16.msra.mxu0 %v334
  %375 = vmatprep.subr.bf16.mxu0 0
  %376 = vmatpush1.bf16.msra.mxu0 %v335
  %377 = vmatprep.subr.bf16.mxu0 0
  %378 = vmatpush1.bf16.msra.mxu0 %v336
  %379 = vmatprep.subr.bf16.mxu0 0
  %380 = vmatpush1.bf16.msra.mxu0 %v337
  %381 = vmatprep.subr.bf16.mxu0 0
  %382 = vmatpush1.bf16.msra.mxu0 %v338
  %383 = vmatprep.subr.bf16.mxu0 0
  %384 = vmatpush1.bf16.msra.mxu0 %v339
  %385 = vmatprep.subr.bf16.mxu0 0
  %386 = vmatpush1.bf16.msra.mxu0 %v340
  %387 = vmatprep.subr.bf16.mxu0 0
  %388 = vmatpush1.bf16.msra.mxu0 %v341
  %389 = vmatprep.subr.bf16.mxu0 0
  %390 = vmatpush1.bf16.msra.mxu0 %v342
  %391 = vmatprep.mubr.bf16.mxu0 %v200
  %392 = vmatmul.mubr.bf16.gmra.mrb[0].mxu0 %v199
  %v393 = vpop.f32.mrb[0].mxu0
  %v394 = vadd.f32 0.0, %v393
  %v395 = vpop.f32.mrb[0].mxu0
  %v396 = vpop.f32.mrb[0].mxu0
  %v397 = vadd.f32 0.0, %v396
  %v398 = vpop.f32.mrb[0].mxu0
  %399 = vmatprep.mubr.bf16.mxu0 %v202
  %400 = vmatmul.mubr.bf16.gmra.mrb[0].mxu0 %v201
  %v401 = vpop.f32.mrb[0].mxu0
  %v402 = vadd.f32 0.0, %v401
  %v403 = vpop.f32.mrb[0].mxu0
  %v404 = vpop.f32.mrb[0].mxu0
  %v405 = vadd.f32 0.0, %v404
  %v406 = vpop.f32.mrb[0].mxu0
  %407 = vmatprep.mubr.bf16.mxu0 %v204
  %408 = vmatmul.mubr.bf16.gmra.mrb[0].mxu0 %v203
  %v409 = vpop.f32.mrb[0].mxu0
  %v410 = vadd.f32 0.0, %v409
  %v411 = vpop.f32.mrb[0].mxu0
  %v412 = vpop.f32.mrb[0].mxu0
  %v413 = vadd.f32 0.0, %v412
  %v414 = vpop.f32.mrb[0].mxu0
  %415 = vmatprep.mubr.bf16.mxu0 %v206
  %416 = vmatmul.mubr.bf16.gmra.mrb[0].mxu0 %v205
  %v417 = vpop.f32.mrb[0].mxu0
  %v418 = vadd.f32 0.0, %v417
  %v419 = vpop.f32.mrb[0].mxu0
  %v420 = vpop.f32.mrb[0].mxu0
  %v421 = vadd.f32 0.0, %v420
  %v422 = vpop.f32.mrb[0].mxu0
  %423 = vmatprep.mubr.bf16.mxu0 %v208
  %424 = vmatmul.mubr.bf16.gmra.mrb[0].mxu0 %v207
  %v425 = vpop.f32.mrb[0].mxu0
  %v426 = vadd.f32 0.0, %v425
  %v427 = vpop.f32.mrb[0].mxu0
  %v428 = vpop.f32.mrb[0].mxu0
  %v429 = vadd.f32 0.0, %v428
  %v430 = vpop.f32.mrb[0].mxu0
  %431 = vmatprep.mubr.bf16.mxu0 %v210
  %432 = vmatmul.mubr.bf16.gmra.mrb[0].mxu0 %v209
  %v433 = vpop.f32.mrb[0].mxu0
  %v434 = vadd.f32 0.0, %v433
  %v435 = vpop.f32.mrb[0].mxu0
  %v436 = vpop.f32.mrb[0].mxu0
  %v437 = vadd.f32 0.0, %v436
  %v438 = vpop.f32.mrb[0].mxu0
  %439 = vmatprep.mubr.bf16.mxu0 %v212
  %440 = vmatmul.mubr.bf16.gmra.mrb[0].mxu0 %v211
  %v441 = vpop.f32.mrb[0].mxu0
  %v442 = vadd.f32 0.0, %v441
  %v443 = vpop.f32.mrb[0].mxu0
  %v444 = vpop.f32.mrb[0].mxu0
  %v445 = vadd.f32 0.0, %v444
  %v446 = vpop.f32.mrb[0].mxu0
  %447 = vmatprep.mubr.bf16.mxu0 %v214
  %448 = vmatmul.mubr.bf16.gmra.mrb[0].mxu0 %v213
  %v449 = vpop.f32.mrb[0].mxu0
  %v450 = vadd.f32 0.0, %v449
  %v451 = vpop.f32.mrb[0].mxu0
  %v452 = vpop.f32.mrb[0].mxu0
  %v453 = vadd.f32 0.0, %v452
  %v454 = vpop.f32.mrb[0].mxu0
  %455 = vmatprep.mubr.bf16.mxu0 %v216
  %456 = vmatmul.mubr.bf16.gmra.mrb[0].mxu0 %v215
  %v457 = vpop.f32.mrb[0].mxu0
  %v458 = vadd.f32 0.0, %v457
  %v459 = vpop.f32.mrb[0].mxu0
  %v460 = vpop.f32.mrb[0].mxu0
  %v461 = vadd.f32 0.0, %v460
  %v462 = vpop.f32.mrb[0].mxu0
  %463 = vmatprep.mubr.bf16.mxu0 %v218
  %464 = vmatmul.mubr.bf16.gmra.mrb[0].mxu0 %v217
  %v465 = vpop.f32.mrb[0].mxu0
  %v466 = vadd.f32 0.0, %v465
  %v467 = vpop.f32.mrb[0].mxu0
  %v468 = vpop.f32.mrb[0].mxu0
  %v469 = vadd.f32 0.0, %v468
  %v470 = vpop.f32.mrb[0].mxu0
  %471 = vmatprep.mubr.bf16.mxu0 %v220
  %472 = vmatmul.mubr.bf16.gmra.mrb[0].mxu0 %v219
  %v473 = vpop.f32.mrb[0].mxu0
  %v474 = vadd.f32 0.0, %v473
  %v475 = vpop.f32.mrb[0].mxu0
  %v476 = vpop.f32.mrb[0].mxu0
  %v477 = vadd.f32 0.0, %v476
  %v478 = vpop.f32.mrb[0].mxu0
  %479 = vmatprep.mubr.bf16.mxu0 %v222
  %480 = vmatmul.mubr.bf16.gmra.mrb[0].mxu0 %v221
  %v481 = vpop.f32.mrb[0].mxu0
  %v482 = vadd.f32 0.0, %v481
  %v483 = vpop.f32.mrb[0].mxu0
  %v484 = vpop.f32.mrb[0].mxu0
  %v485 = vadd.f32 0.0, %v484
  %v486 = vpop.f32.mrb[0].mxu0
  %487 = vmatprep.mubr.bf16.mxu0 %v224
  %488 = vmatmul.mubr.bf16.gmra.mrb[0].mxu0 %v223
  %v489 = vpop.f32.mrb[0].mxu0
  %v490 = vadd.f32 0.0, %v489
  %v491 = vpop.f32.mrb[0].mxu0
  %v492 = vpop.f32.mrb[0].mxu0
  %v493 = vadd.f32 0.0, %v492
  %v494 = vpop.f32.mrb[0].mxu0
  %495 = vmatprep.mubr.bf16.mxu0 %v226
  %496 = vmatmul.mubr.bf16.gmra.mrb[0].mxu0 %v225
  %v497 = vpop.f32.mrb[0].mxu0
  %v498 = vadd.f32 0.0, %v497
  %v499 = vpop.f32.mrb[0].mxu0
  %v500 = vpop.f32.mrb[0].mxu0
  %v501 = vadd.f32 0.0, %v500
  %v502 = vpop.f32.mrb[0].mxu0
  %503 = vmatprep.mubr.bf16.mxu0 %v228
  %504 = vmatmul.mubr.bf16.gmra.mrb[0].mxu0 %v227
  %v505 = vpop.f32.mrb[0].mxu0
  %v506 = vadd.f32 0.0, %v505
  %v507 = vpop.f32.mrb[0].mxu0
  %v508 = vpop.f32.mrb[0].mxu0
  %v509 = vadd.f32 0.0, %v508
  %v510 = vpop.f32.mrb[0].mxu0
  %511 = vmatprep.mubr.bf16.mxu0 %v230
  %512 = vmatmul.mubr.bf16.gmra.mrb[0].mxu0 %v229
  %v513 = vpop.f32.mrb[0].mxu0
  %v514 = vadd.f32 0.0, %v513
  %v515 = vpop.f32.mrb[0].mxu0
  %v516 = vpop.f32.mrb[0].mxu0
  %v517 = vadd.f32 0.0, %v516
  %v518 = vpop.f32.mrb[0].mxu0
  %519 = vdwg.mxu0
  %v520 = vld [vmem:[%s2] sm:$0xf]
  %v521 = vld [vmem:[%s2 + $0x4] sm:$0xf]
  %v522 = vld [vmem:[%s2 + $0x8] sm:$0xf]
  %v523 = vld [vmem:[%s2 + $0xc] sm:$0xf]
  %v524 = vld [vmem:[%s2 + $0x10] sm:$0xf]
  %v525 = vld [vmem:[%s2 + $0x14] sm:$0xf]
  %v526 = vld [vmem:[%s2 + $0x18] sm:$0xf]
  %v527 = vld [vmem:[%s2 + $0x1c] sm:$0xf]
  %v528 = vld [vmem:[%s2 + $0x20] sm:$0xf]
  %v529 = vld [vmem:[%s2 + $0x24] sm:$0xf]
  %v530 = vld [vmem:[%s2 + $0x28] sm:$0xf]
  %v531 = vld [vmem:[%s2 + $0x2c] sm:$0xf]
  %v532 = vld [vmem:[%s2 + $0x30] sm:$0xf]
  %v533 = vld [vmem:[%s2 + $0x34] sm:$0xf]
  %v534 = vld [vmem:[%s2 + $0x38] sm:$0xf]
  %v535 = vld [vmem:[%s2 + $0x3c] sm:$0xf]
  %v536 = vpack.c.bf16 %v397, %v394
  %v537 = vpack.c.bf16 %v405, %v402
  %v538 = vpack.c.bf16 %v413, %v410
  %v539 = vpack.c.bf16 %v421, %v418
  %v540 = vpack.c.bf16 %v429, %v426
  %v541 = vpack.c.bf16 %v437, %v434
  %v542 = vpack.c.bf16 %v445, %v442
  %v543 = vpack.c.bf16 %v453, %v450
  %v544 = vpack.c.bf16 %v461, %v458
  %v545 = vpack.c.bf16 %v469, %v466
  %v546 = vpack.c.bf16 %v477, %v474
  %v547 = vpack.c.bf16 %v485, %v482
  %v548 = vpack.c.bf16 %v493, %v490
  %v549 = vpack.c.bf16 %v501, %v498
  %v550 = vpack.c.bf16 %v509, %v506
  %v551 = vpack.c.bf16 %v517, %v514
  %v552 = vld [vmem:[%s3] sm:$0xf]
  %v553 = vld [vmem:[%s3 + $0x4] sm:$0xf]
  %v554 = vld [vmem:[%s3 + $0x8] sm:$0xf]
  %v555 = vld [vmem:[%s3 + $0xc] sm:$0xf]
  %v556 = vld [vmem:[%s3 + $0x10] sm:$0xf]
  %v557 = vld [vmem:[%s3 + $0x14] sm:$0xf]
  %v558 = vld [vmem:[%s3 + $0x18] sm:$0xf]
  %v559 = vld [vmem:[%s3 + $0x1c] sm:$0xf]
  %v560 = vld [vmem:[%s3 + $0x20] sm:$0xf]
  %v561 = vld [vmem:[%s3 + $0x24] sm:$0xf]
  %v562 = vld [vmem:[%s3 + $0x28] sm:$0xf]
  %v563 = vld [vmem:[%s3 + $0x2c] sm:$0xf]
  %v564 = vld [vmem:[%s3 + $0x30] sm:$0xf]
  %v565 = vld [vmem:[%s3 + $0x34] sm:$0xf]
  %v566 = vld [vmem:[%s3 + $0x38] sm:$0xf]
  %v567 = vld [vmem:[%s3 + $0x3c] sm:$0xf]
  %v584 = vunpack.c.l.b16 %v552
  %v585 = vunpack.c.l.b16 %v553
  %v586 = vunpack.c.l.b16 %v554
  %v587 = vunpack.c.l.b16 %v555
  %v588 = vunpack.c.l.b16 %v556
  %v589 = vunpack.c.l.b16 %v557
  %v590 = vunpack.c.l.b16 %v558
  %v591 = vunpack.c.l.b16 %v559
  %v592 = vunpack.c.l.b16 %v560
  %v593 = vunpack.c.l.b16 %v561
  %v594 = vunpack.c.l.b16 %v562
  %v595 = vunpack.c.l.b16 %v563
  %v596 = vunpack.c.l.b16 %v564
  %v597 = vunpack.c.l.b16 %v565
  %v598 = vunpack.c.l.b16 %v566
  %v599 = vunpack.c.l.b16 %v567
  %v600 = vpack.c.b16 %v585, %v584
  %v601 = vpack.c.b16 %v587, %v586
  %v602 = vpack.c.b16 %v589, %v588
  %v603 = vpack.c.b16 %v591, %v590
  %v604 = vpack.c.b16 %v593, %v592
  %v605 = vpack.c.b16 %v595, %v594
  %v606 = vpack.c.b16 %v597, %v596
  %v607 = vpack.c.b16 %v599, %v598
  %616 = vmatprep.subr.bf16.mxu0 0
  %617 = vmatpush1.bf16.msra.mxu0 %v600
  %618 = vmatprep.subr.bf16.mxu0 0
  %619 = vmatpush1.bf16.msra.mxu0 %v601
  %620 = vmatprep.subr.bf16.mxu0 0
  %621 = vmatpush1.bf16.msra.mxu0 %v602
  %622 = vmatprep.subr.bf16.mxu0 0
  %623 = vmatpush1.bf16.msra.mxu0 %v603
  %624 = vmatprep.subr.bf16.mxu0 0
  %625 = vmatpush1.bf16.msra.mxu0 %v604
  %626 = vmatprep.subr.bf16.mxu0 0
  %627 = vmatpush1.bf16.msra.mxu0 %v605
  %628 = vmatprep.subr.bf16.mxu0 0
  %629 = vmatpush1.bf16.msra.mxu0 %v606
  %630 = vmatprep.subr.bf16.mxu0 0
  %631 = vmatpush1.bf16.msra.mxu0 %v607
  %632 = vmatprep.subr.bf16.mxu0 0
  %633 = vmatpush1.bf16.msra.mxu0 0
  %634 = vmatprep.subr.bf16.mxu0 0
  %635 = vmatpush1.bf16.msra.mxu0 0
  %636 = vmatprep.subr.bf16.mxu0 0
  %637 = vmatpush1.bf16.msra.mxu0 0
  %638 = vmatprep.subr.bf16.mxu0 0
  %639 = vmatpush1.bf16.msra.mxu0 0
  %640 = vmatprep.subr.bf16.mxu0 0
  %641 = vmatpush1.bf16.msra.mxu0 0
  %642 = vmatprep.subr.bf16.mxu0 0
  %643 = vmatpush1.bf16.msra.mxu0 0
  %644 = vmatprep.subr.bf16.mxu0 0
  %645 = vmatpush1.bf16.msra.mxu0 0
  %646 = vmatprep.subr.bf16.mxu0 0
  %647 = vmatpush1.bf16.msra.mxu0 0
  %648 = vmatprep.mubr.bf16.mxu0 0
  %649 = vmatmul.mubr.bf16.gmra.mrb[0].mxu0 %v536
  %v650 = vpop.f32.mrb[0].mxu0
  %v651 = vadd.f32 0.0, %v650
  %v652 = vpop.f32.mrb[0].mxu0
  %v653 = vpop.f32.mrb[0].mxu0
  %v654 = vadd.f32 0.0, %v653
  %v655 = vpop.f32.mrb[0].mxu0
  %656 = vmatprep.mubr.bf16.mxu0 0
  %657 = vmatmul.mubr.bf16.gmra.mrb[0].mxu0 %v537
  %v658 = vpop.f32.mrb[0].mxu0
  %v659 = vadd.f32 0.0, %v658
  %v660 = vpop.f32.mrb[0].mxu0
  %v661 = vpop.f32.mrb[0].mxu0
  %v662 = vadd.f32 0.0, %v661
  %v663 = vpop.f32.mrb[0].mxu0
  %664 = vmatprep.mubr.bf16.mxu0 0
  %665 = vmatmul.mubr.bf16.gmra.mrb[0].mxu0 %v538
  %v666 = vpop.f32.mrb[0].mxu0
  %v667 = vadd.f32 0.0, %v666
  %v668 = vpop.f32.mrb[0].mxu0
  %v669 = vpop.f32.mrb[0].mxu0
  %v670 = vadd.f32 0.0, %v669
  %v671 = vpop.f32.mrb[0].mxu0
  %672 = vmatprep.mubr.bf16.mxu0 0
  %673 = vmatmul.mubr.bf16.gmra.mrb[0].mxu0 %v539
  %v674 = vpop.f32.mrb[0].mxu0
  %v675 = vadd.f32 0.0, %v674
  %v676 = vpop.f32.mrb[0].mxu0
  %v677 = vpop.f32.mrb[0].mxu0
  %v678 = vadd.f32 0.0, %v677
  %v679 = vpop.f32.mrb[0].mxu0
  %680 = vmatprep.mubr.bf16.mxu0 0
  %681 = vmatmul.mubr.bf16.gmra.mrb[0].mxu0 %v540
  %v682 = vpop.f32.mrb[0].mxu0
  %v683 = vadd.f32 0.0, %v682
  %v684 = vpop.f32.mrb[0].mxu0
  %v685 = vpop.f32.mrb[0].mxu0
  %v686 = vadd.f32 0.0, %v685
  %v687 = vpop.f32.mrb[0].mxu0
  %688 = vmatprep.mubr.bf16.mxu0 0
  %689 = vmatmul.mubr.bf16.gmra.mrb[0].mxu0 %v541
  %v690 = vpop.f32.mrb[0].mxu0
  %v691 = vadd.f32 0.0, %v690
  %v692 = vpop.f32.mrb[0].mxu0
  %v693 = vpop.f32.mrb[0].mxu0
  %v694 = vadd.f32 0.0, %v693
  %v695 = vpop.f32.mrb[0].mxu0
  %696 = vmatprep.mubr.bf16.mxu0 0
  %697 = vmatmul.mubr.bf16.gmra.mrb[0].mxu0 %v542
  %v698 = vpop.f32.mrb[0].mxu0
  %v699 = vadd.f32 0.0, %v698
  %v700 = vpop.f32.mrb[0].mxu0
  %v701 = vpop.f32.mrb[0].mxu0
  %v702 = vadd.f32 0.0, %v701
  %v703 = vpop.f32.mrb[0].mxu0
  %704 = vmatprep.mubr.bf16.mxu0 0
  %705 = vmatmul.mubr.bf16.gmra.mrb[0].mxu0 %v543
  %v706 = vpop.f32.mrb[0].mxu0
  %v707 = vadd.f32 0.0, %v706
  %v708 = vpop.f32.mrb[0].mxu0
  %v709 = vpop.f32.mrb[0].mxu0
  %v710 = vadd.f32 0.0, %v709
  %v711 = vpop.f32.mrb[0].mxu0
  %712 = vmatprep.mubr.bf16.mxu0 0
  %713 = vmatmul.mubr.bf16.gmra.mrb[0].mxu0 %v544
  %v714 = vpop.f32.mrb[0].mxu0
  %v715 = vadd.f32 0.0, %v714
  %v716 = vpop.f32.mrb[0].mxu0
  %v717 = vpop.f32.mrb[0].mxu0
  %v718 = vadd.f32 0.0, %v717
  %v719 = vpop.f32.mrb[0].mxu0
  %720 = vmatprep.mubr.bf16.mxu0 0
  %721 = vmatmul.mubr.bf16.gmra.mrb[0].mxu0 %v545
  %v722 = vpop.f32.mrb[0].mxu0
  %v723 = vadd.f32 0.0, %v722
  %v724 = vpop.f32.mrb[0].mxu0
  %v725 = vpop.f32.mrb[0].mxu0
  %v726 = vadd.f32 0.0, %v725
  %v727 = vpop.f32.mrb[0].mxu0
  %728 = vmatprep.mubr.bf16.mxu0 0
  %729 = vmatmul.mubr.bf16.gmra.mrb[0].mxu0 %v546
  %v730 = vpop.f32.mrb[0].mxu0
  %v731 = vadd.f32 0.0, %v730
  %v732 = vpop.f32.mrb[0].mxu0
  %v733 = vpop.f32.mrb[0].mxu0
  %v734 = vadd.f32 0.0, %v733
  %v735 = vpop.f32.mrb[0].mxu0
  %736 = vmatprep.mubr.bf16.mxu0 0
  %737 = vmatmul.mubr.bf16.gmra.mrb[0].mxu0 %v547
  %v738 = vpop.f32.mrb[0].mxu0
  %v739 = vadd.f32 0.0, %v738
  %v740 = vpop.f32.mrb[0].mxu0
  %v741 = vpop.f32.mrb[0].mxu0
  %v742 = vadd.f32 0.0, %v741
  %v743 = vpop.f32.mrb[0].mxu0
  %744 = vmatprep.mubr.bf16.mxu0 0
  %745 = vmatmul.mubr.bf16.gmra.mrb[0].mxu0 %v548
  %v746 = vpop.f32.mrb[0].mxu0
  %v747 = vadd.f32 0.0, %v746
  %v748 = vpop.f32.mrb[0].mxu0
  %v749 = vpop.f32.mrb[0].mxu0
  %v750 = vadd.f32 0.0, %v749
  %v751 = vpop.f32.mrb[0].mxu0
  %752 = vmatprep.mubr.bf16.mxu0 0
  %753 = vmatmul.mubr.bf16.gmra.mrb[0].mxu0 %v549
  %v754 = vpop.f32.mrb[0].mxu0
  %v755 = vadd.f32 0.0, %v754
  %v756 = vpop.f32.mrb[0].mxu0
  %v757 = vpop.f32.mrb[0].mxu0
  %v758 = vadd.f32 0.0, %v757
  %v759 = vpop.f32.mrb[0].mxu0
  %760 = vmatprep.mubr.bf16.mxu0 0
  %761 = vmatmul.mubr.bf16.gmra.mrb[0].mxu0 %v550
  %v762 = vpop.f32.mrb[0].mxu0
  %v763 = vadd.f32 0.0, %v762
  %v764 = vpop.f32.mrb[0].mxu0
  %v765 = vpop.f32.mrb[0].mxu0
  %v766 = vadd.f32 0.0, %v765
  %v767 = vpop.f32.mrb[0].mxu0
  %768 = vmatprep.mubr.bf16.mxu0 0
  %769 = vmatmul.mubr.bf16.gmra.mrb[0].mxu0 %v551
  %v770 = vpop.f32.mrb[0].mxu0
  %v771 = vadd.f32 0.0, %v770
  %v772 = vpop.f32.mrb[0].mxu0
  %v773 = vpop.f32.mrb[0].mxu0
  %v774 = vadd.f32 0.0, %v773
  %v775 = vpop.f32.mrb[0].mxu0
  %776 = vdwg.mxu0
  %v793 = vunpack.c.l.b16 %v520
  %v794 = vunpack.c.l.b16 %v521
  %v795 = vunpack.c.l.b16 %v522
  %v796 = vunpack.c.l.b16 %v523
  %v797 = vunpack.c.l.b16 %v524
  %v798 = vunpack.c.l.b16 %v525
  %v799 = vunpack.c.l.b16 %v526
  %v800 = vunpack.c.l.b16 %v527
  %v801 = vunpack.c.l.b16 %v528
  %v802 = vunpack.c.l.b16 %v529
  %v803 = vunpack.c.l.b16 %v530
  %v804 = vunpack.c.l.b16 %v531
  %v805 = vunpack.c.l.b16 %v532
  %v806 = vunpack.c.l.b16 %v533
  %v807 = vunpack.c.l.b16 %v534
  %v808 = vunpack.c.l.b16 %v535
  %v809 = vpack.c.b16 %v794, %v793
  %v810 = vpack.c.b16 %v796, %v795
  %v811 = vpack.c.b16 %v798, %v797
  %v812 = vpack.c.b16 %v800, %v799
  %v813 = vpack.c.b16 %v802, %v801
  %v814 = vpack.c.b16 %v804, %v803
  %v815 = vpack.c.b16 %v806, %v805
  %v816 = vpack.c.b16 %v808, %v807
  %825 = vmatprep.subr.bf16.mxu0 0
  %826 = vmatpush1.bf16.msra.mxu0 %v809
  %827 = vmatprep.subr.bf16.mxu0 0
  %828 = vmatpush1.bf16.msra.mxu0 %v810
  %829 = vmatprep.subr.bf16.mxu0 0
  %830 = vmatpush1.bf16.msra.mxu0 %v811
  %831 = vmatprep.subr.bf16.mxu0 0
  %832 = vmatpush1.bf16.msra.mxu0 %v812
  %833 = vmatprep.subr.bf16.mxu0 0
  %834 = vmatpush1.bf16.msra.mxu0 %v813
  %835 = vmatprep.subr.bf16.mxu0 0
  %836 = vmatpush1.bf16.msra.mxu0 %v814
  %837 = vmatprep.subr.bf16.mxu0 0
  %838 = vmatpush1.bf16.msra.mxu0 %v815
  %839 = vmatprep.subr.bf16.mxu0 0
  %840 = vmatpush1.bf16.msra.mxu0 %v816
  %841 = vmatprep.subr.bf16.mxu0 0
  %842 = vmatpush1.bf16.msra.mxu0 0
  %843 = vmatprep.subr.bf16.mxu0 0
  %844 = vmatpush1.bf16.msra.mxu0 0
  %845 = vmatprep.subr.bf16.mxu0 0
  %846 = vmatpush1.bf16.msra.mxu0 0
  %847 = vmatprep.subr.bf16.mxu0 0
  %848 = vmatpush1.bf16.msra.mxu0 0
  %849 = vmatprep.subr.bf16.mxu0 0
  %850 = vmatpush1.bf16.msra.mxu0 0
  %851 = vmatprep.subr.bf16.mxu0 0
  %852 = vmatpush1.bf16.msra.mxu0 0
  %853 = vmatprep.subr.bf16.mxu0 0
  %854 = vmatpush1.bf16.msra.mxu0 0
  %855 = vmatprep.subr.bf16.mxu0 0
  %856 = vmatpush1.bf16.msra.mxu0 0
  %857 = vmatprep.mubr.bf16.mxu0 0
  %858 = vmatmul.mubr.bf16.gmra.mrb[0].mxu0 %v327
  %v859 = vpop.f32.mrb[0].mxu0
  %v860 = vadd.f32 %v651, %v859
  %v861 = vpop.f32.mrb[0].mxu0
  %v862 = vpop.f32.mrb[0].mxu0
  %v863 = vadd.f32 %v654, %v862
  %v864 = vpop.f32.mrb[0].mxu0
  %865 = vmatprep.mubr.bf16.mxu0 0
  %866 = vmatmul.mubr.bf16.gmra.mrb[0].mxu0 %v328
  %v867 = vpop.f32.mrb[0].mxu0
  %v868 = vadd.f32 %v659, %v867
  %v869 = vpop.f32.mrb[0].mxu0
  %v870 = vpop.f32.mrb[0].mxu0
  %v871 = vadd.f32 %v662, %v870
  %v872 = vpop.f32.mrb[0].mxu0
  %873 = vmatprep.mubr.bf16.mxu0 0
  %874 = vmatmul.mubr.bf16.gmra.mrb[0].mxu0 %v329
  %v875 = vpop.f32.mrb[0].mxu0
  %v876 = vadd.f32 %v667, %v875
  %v877 = vpop.f32.mrb[0].mxu0
  %v878 = vpop.f32.mrb[0].mxu0
  %v879 = vadd.f32 %v670, %v878
  %v880 = vpop.f32.mrb[0].mxu0
  %881 = vmatprep.mubr.bf16.mxu0 0
  %882 = vmatmul.mubr.bf16.gmra.mrb[0].mxu0 %v330
  %v883 = vpop.f32.mrb[0].mxu0
  %v884 = vadd.f32 %v675, %v883
  %v885 = vpop.f32.mrb[0].mxu0
  %v886 = vpop.f32.mrb[0].mxu0
  %v887 = vadd.f32 %v678, %v886
  %v888 = vpop.f32.mrb[0].mxu0
  %889 = vmatprep.mubr.bf16.mxu0 0
  %890 = vmatmul.mubr.bf16.gmra.mrb[0].mxu0 %v331
  %v891 = vpop.f32.mrb[0].mxu0
  %v892 = vadd.f32 %v683, %v891
  %v893 = vpop.f32.mrb[0].mxu0
  %v894 = vpop.f32.mrb[0].mxu0
  %v895 = vadd.f32 %v686, %v894
  %v896 = vpop.f32.mrb[0].mxu0
  %897 = vmatprep.mubr.bf16.mxu0 0
  %898 = vmatmul.mubr.bf16.gmra.mrb[0].mxu0 %v332
  %v899 = vpop.f32.mrb[0].mxu0
  %v900 = vadd.f32 %v691, %v899
  %v901 = vpop.f32.mrb[0].mxu0
  %v902 = vpop.f32.mrb[0].mxu0
  %v903 = vadd.f32 %v694, %v902
  %v904 = vpop.f32.mrb[0].mxu0
  %905 = vmatprep.mubr.bf16.mxu0 0
  %906 = vmatmul.mubr.bf16.gmra.mrb[0].mxu0 %v333
  %v907 = vpop.f32.mrb[0].mxu0
  %v908 = vadd.f32 %v699, %v907
  %v909 = vpop.f32.mrb[0].mxu0
  %v910 = vpop.f32.mrb[0].mxu0
  %v911 = vadd.f32 %v702, %v910
  %v912 = vpop.f32.mrb[0].mxu0
  %913 = vmatprep.mubr.bf16.mxu0 0
  %914 = vmatmul.mubr.bf16.gmra.mrb[0].mxu0 %v334
  %v915 = vpop.f32.mrb[0].mxu0
  %v916 = vadd.f32 %v707, %v915
  %v917 = vpop.f32.mrb[0].mxu0
  %v918 = vpop.f32.mrb[0].mxu0
  %v919 = vadd.f32 %v710, %v918
  %v920 = vpop.f32.mrb[0].mxu0
  %921 = vmatprep.mubr.bf16.mxu0 0
  %922 = vmatmul.mubr.bf16.gmra.mrb[0].mxu0 %v335
  %v923 = vpop.f32.mrb[0].mxu0
  %v924 = vadd.f32 %v715, %v923
  %v925 = vpop.f32.mrb[0].mxu0
  %v926 = vpop.f32.mrb[0].mxu0
  %v927 = vadd.f32 %v718, %v926
  %v928 = vpop.f32.mrb[0].mxu0
  %929 = vmatprep.mubr.bf16.mxu0 0
  %930 = vmatmul.mubr.bf16.gmra.mrb[0].mxu0 %v336
  %v931 = vpop.f32.mrb[0].mxu0
  %v932 = vadd.f32 %v723, %v931
  %v933 = vpop.f32.mrb[0].mxu0
  %v934 = vpop.f32.mrb[0].mxu0
  %v935 = vadd.f32 %v726, %v934
  %v936 = vpop.f32.mrb[0].mxu0
  %937 = vmatprep.mubr.bf16.mxu0 0
  %938 = vmatmul.mubr.bf16.gmra.mrb[0].mxu0 %v337
  %v939 = vpop.f32.mrb[0].mxu0
  %v940 = vadd.f32 %v731, %v939
  %v941 = vpop.f32.mrb[0].mxu0
  %v942 = vpop.f32.mrb[0].mxu0
  %v943 = vadd.f32 %v734, %v942
  %v944 = vpop.f32.mrb[0].mxu0
  %945 = vmatprep.mubr.bf16.mxu0 0
  %946 = vmatmul.mubr.bf16.gmra.mrb[0].mxu0 %v338
  %v947 = vpop.f32.mrb[0].mxu0
  %v948 = vadd.f32 %v739, %v947
  %v949 = vpop.f32.mrb[0].mxu0
  %v950 = vpop.f32.mrb[0].mxu0
  %v951 = vadd.f32 %v742, %v950
  %v952 = vpop.f32.mrb[0].mxu0
  %953 = vmatprep.mubr.bf16.mxu0 0
  %954 = vmatmul.mubr.bf16.gmra.mrb[0].mxu0 %v339
  %v955 = vpop.f32.mrb[0].mxu0
  %v956 = vadd.f32 %v747, %v955
  %v957 = vpop.f32.mrb[0].mxu0
  %v958 = vpop.f32.mrb[0].mxu0
  %v959 = vadd.f32 %v750, %v958
  %v960 = vpop.f32.mrb[0].mxu0
  %961 = vmatprep.mubr.bf16.mxu0 0
  %962 = vmatmul.mubr.bf16.gmra.mrb[0].mxu0 %v340
  %v963 = vpop.f32.mrb[0].mxu0
  %v964 = vadd.f32 %v755, %v963
  %v965 = vpop.f32.mrb[0].mxu0
  %v966 = vpop.f32.mrb[0].mxu0
  %v967 = vadd.f32 %v758, %v966
  %v968 = vpop.f32.mrb[0].mxu0
  %969 = vmatprep.mubr.bf16.mxu0 0
  %970 = vmatmul.mubr.bf16.gmra.mrb[0].mxu0 %v341
  %v971 = vpop.f32.mrb[0].mxu0
  %v972 = vadd.f32 %v763, %v971
  %v973 = vpop.f32.mrb[0].mxu0
  %v974 = vpop.f32.mrb[0].mxu0
  %v975 = vadd.f32 %v766, %v974
  %v976 = vpop.f32.mrb[0].mxu0
  %977 = vmatprep.mubr.bf16.mxu0 0
  %978 = vmatmul.mubr.bf16.gmra.mrb[0].mxu0 %v342
  %v979 = vpop.f32.mrb[0].mxu0
  %v980 = vadd.f32 %v771, %v979
  %v981 = vpop.f32.mrb[0].mxu0
  %v982 = vpop.f32.mrb[0].mxu0
  %v983 = vadd.f32 %v774, %v982
  %v984 = vpop.f32.mrb[0].mxu0
  %985 = vdwg.mxu0
  %v986 = vld [vmem:[%s4] sm:$0x1]
  %v988 = vlaneseq
  %v989 = vshrl.u32 %v988, 7
  %v990 = vsub.s32 0, %v989
  %v991 = vrot.slane %v986, %v990
  %v993 = vadd.f32 %v860, %v991
  %v994 = vadd.f32 %v863, %v991
  %v995 = vadd.f32 %v868, %v991
  %v996 = vadd.f32 %v871, %v991
  %v997 = vadd.f32 %v876, %v991
  %v998 = vadd.f32 %v879, %v991
  %v999 = vadd.f32 %v884, %v991
  %v1000 = vadd.f32 %v887, %v991
  %v1001 = vadd.f32 %v892, %v991
  %v1002 = vadd.f32 %v895, %v991
  %v1003 = vadd.f32 %v900, %v991
  %v1004 = vadd.f32 %v903, %v991
  %v1005 = vadd.f32 %v908, %v991
  %v1006 = vadd.f32 %v911, %v991
  %v1007 = vadd.f32 %v916, %v991
  %v1008 = vadd.f32 %v919, %v991
  %v1009 = vadd.f32 %v924, %v991
  %v1010 = vadd.f32 %v927, %v991
  %v1011 = vadd.f32 %v932, %v991
  %v1012 = vadd.f32 %v935, %v991
  %v1013 = vadd.f32 %v940, %v991
  %v1014 = vadd.f32 %v943, %v991
  %v1015 = vadd.f32 %v948, %v991
  %v1016 = vadd.f32 %v951, %v991
  %v1017 = vadd.f32 %v956, %v991
  %v1018 = vadd.f32 %v959, %v991
  %v1019 = vadd.f32 %v964, %v991
  %v1020 = vadd.f32 %v967, %v991
  %v1021 = vadd.f32 %v972, %v991
  %v1022 = vadd.f32 %v975, %v991
  %v1023 = vadd.f32 %v980, %v991
  %v1024 = vadd.f32 %v983, %v991
  %v1025 = vxor.u32 %v993, 2147483648
  %v1026 = vxor.u32 %v994, 2147483648
  %v1027 = vxor.u32 %v995, 2147483648
  %v1028 = vxor.u32 %v996, 2147483648
  %v1029 = vxor.u32 %v997, 2147483648
  %v1030 = vxor.u32 %v998, 2147483648
  %v1031 = vxor.u32 %v999, 2147483648
  %v1032 = vxor.u32 %v1000, 2147483648
  %v1033 = vxor.u32 %v1001, 2147483648
  %v1034 = vxor.u32 %v1002, 2147483648
  %v1035 = vxor.u32 %v1003, 2147483648
  %v1036 = vxor.u32 %v1004, 2147483648
  %v1037 = vxor.u32 %v1005, 2147483648
  %v1038 = vxor.u32 %v1006, 2147483648
  %v1039 = vxor.u32 %v1007, 2147483648
  %v1040 = vxor.u32 %v1008, 2147483648
  %v1041 = vxor.u32 %v1009, 2147483648
  %v1042 = vxor.u32 %v1010, 2147483648
  %v1043 = vxor.u32 %v1011, 2147483648
  %v1044 = vxor.u32 %v1012, 2147483648
  %v1045 = vxor.u32 %v1013, 2147483648
  %v1046 = vxor.u32 %v1014, 2147483648
  %v1047 = vxor.u32 %v1015, 2147483648
  %v1048 = vxor.u32 %v1016, 2147483648
  %v1049 = vxor.u32 %v1017, 2147483648
  %v1050 = vxor.u32 %v1018, 2147483648
  %v1051 = vxor.u32 %v1019, 2147483648
  %v1052 = vxor.u32 %v1020, 2147483648
  %v1053 = vxor.u32 %v1021, 2147483648
  %v1054 = vxor.u32 %v1022, 2147483648
  %v1055 = vxor.u32 %v1023, 2147483648
  %v1056 = vxor.u32 %v1024, 2147483648
  %v1057 = vmul.f32 %v1025, 1.442695
  %v1058 = vpow.pop %v1057
  %v1059 = vmul.f32 %v1026, 1.442695
  %v1060 = vpow.pop %v1059
  %v1061 = vmul.f32 %v1027, 1.442695
  %v1062 = vpow.pop %v1061
  %v1063 = vmul.f32 %v1028, 1.442695
  %v1064 = vpow.pop %v1063
  %v1065 = vmul.f32 %v1029, 1.442695
  %v1066 = vpow.pop %v1065
  %v1067 = vmul.f32 %v1030, 1.442695
  %v1068 = vpow.pop %v1067
  %v1069 = vmul.f32 %v1031, 1.442695
  %v1070 = vpow.pop %v1069
  %v1071 = vmul.f32 %v1032, 1.442695
  %v1072 = vpow.pop %v1071
  %v1073 = vmul.f32 %v1033, 1.442695
  %v1074 = vpow.pop %v1073
  %v1075 = vmul.f32 %v1034, 1.442695
  %v1076 = vpow.pop %v1075
  %v1077 = vmul.f32 %v1035, 1.442695
  %v1078 = vpow.pop %v1077
  %v1079 = vmul.f32 %v1036, 1.442695
  %v1080 = vpow.pop %v1079
  %v1081 = vmul.f32 %v1037, 1.442695
  %v1082 = vpow.pop %v1081
  %v1083 = vmul.f32 %v1038, 1.442695
  %v1084 = vpow.pop %v1083
  %v1085 = vmul.f32 %v1039, 1.442695
  %v1086 = vpow.pop %v1085
  %v1087 = vmul.f32 %v1040, 1.442695
  %v1088 = vpow.pop %v1087
  %v1089 = vmul.f32 %v1041, 1.442695
  %v1090 = vpow.pop %v1089
  %v1091 = vmul.f32 %v1042, 1.442695
  %v1092 = vpow.pop %v1091
  %v1093 = vmul.f32 %v1043, 1.442695
  %v1094 = vpow.pop %v1093
  %v1095 = vmul.f32 %v1044, 1.442695
  %v1096 = vpow.pop %v1095
  %v1097 = vmul.f32 %v1045, 1.442695
  %v1098 = vpow.pop %v1097
  %v1099 = vmul.f32 %v1046, 1.442695
  %v1100 = vpow.pop %v1099
  %v1101 = vmul.f32 %v1047, 1.442695
  %v1102 = vpow.pop %v1101
  %v1103 = vmul.f32 %v1048, 1.442695
  %v1104 = vpow.pop %v1103
  %v1105 = vmul.f32 %v1049, 1.442695
  %v1106 = vpow.pop %v1105
  %v1107 = vmul.f32 %v1050, 1.442695
  %v1108 = vpow.pop %v1107
  %v1109 = vmul.f32 %v1051, 1.442695
  %v1110 = vpow.pop %v1109
  %v1111 = vmul.f32 %v1052, 1.442695
  %v1112 = vpow.pop %v1111
  %v1113 = vmul.f32 %v1053, 1.442695
  %v1114 = vpow.pop %v1113
  %v1115 = vmul.f32 %v1054, 1.442695
  %v1116 = vpow.pop %v1115
  %v1117 = vmul.f32 %v1055, 1.442695
  %v1118 = vpow.pop %v1117
  %v1119 = vmul.f32 %v1056, 1.442695
  %v1120 = vpow.pop %v1119
  %v1121 = vadd.f32 %v1058, 1.0
  %v1122 = vadd.f32 %v1060, 1.0
  %v1123 = vadd.f32 %v1062, 1.0
  %v1124 = vadd.f32 %v1064, 1.0
  %v1125 = vadd.f32 %v1066, 1.0
  %v1126 = vadd.f32 %v1068, 1.0
  %v1127 = vadd.f32 %v1070, 1.0
  %v1128 = vadd.f32 %v1072, 1.0
  %v1129 = vadd.f32 %v1074, 1.0
  %v1130 = vadd.f32 %v1076, 1.0
  %v1131 = vadd.f32 %v1078, 1.0
  %v1132 = vadd.f32 %v1080, 1.0
  %v1133 = vadd.f32 %v1082, 1.0
  %v1134 = vadd.f32 %v1084, 1.0
  %v1135 = vadd.f32 %v1086, 1.0
  %v1136 = vadd.f32 %v1088, 1.0
  %v1137 = vadd.f32 %v1090, 1.0
  %v1138 = vadd.f32 %v1092, 1.0
  %v1139 = vadd.f32 %v1094, 1.0
  %v1140 = vadd.f32 %v1096, 1.0
  %v1141 = vadd.f32 %v1098, 1.0
  %v1142 = vadd.f32 %v1100, 1.0
  %v1143 = vadd.f32 %v1102, 1.0
  %v1144 = vadd.f32 %v1104, 1.0
  %v1145 = vadd.f32 %v1106, 1.0
  %v1146 = vadd.f32 %v1108, 1.0
  %v1147 = vadd.f32 %v1110, 1.0
  %v1148 = vadd.f32 %v1112, 1.0
  %v1149 = vadd.f32 %v1114, 1.0
  %v1150 = vadd.f32 %v1116, 1.0
  %v1151 = vadd.f32 %v1118, 1.0
  %v1152 = vadd.f32 %v1120, 1.0
  %v1153 = vrcp.pop %v1121
  %v1154 = vmul.f32 1.0, %v1153
  %v1155 = vrcp.pop %v1122
  %v1156 = vmul.f32 1.0, %v1155
  %v1157 = vrcp.pop %v1123
  %v1158 = vmul.f32 1.0, %v1157
  %v1159 = vrcp.pop %v1124
  %v1160 = vmul.f32 1.0, %v1159
  %v1161 = vrcp.pop %v1125
  %v1162 = vmul.f32 1.0, %v1161
  %v1163 = vrcp.pop %v1126
  %v1164 = vmul.f32 1.0, %v1163
  %v1165 = vrcp.pop %v1127
  %v1166 = vmul.f32 1.0, %v1165
  %v1167 = vrcp.pop %v1128
  %v1168 = vmul.f32 1.0, %v1167
  %v1169 = vrcp.pop %v1129
  %v1170 = vmul.f32 1.0, %v1169
  %v1171 = vrcp.pop %v1130
  %v1172 = vmul.f32 1.0, %v1171
  %v1173 = vrcp.pop %v1131
  %v1174 = vmul.f32 1.0, %v1173
  %v1175 = vrcp.pop %v1132
  %v1176 = vmul.f32 1.0, %v1175
  %v1177 = vrcp.pop %v1133
  %v1178 = vmul.f32 1.0, %v1177
  %v1179 = vrcp.pop %v1134
  %v1180 = vmul.f32 1.0, %v1179
  %v1181 = vrcp.pop %v1135
  %v1182 = vmul.f32 1.0, %v1181
  %v1183 = vrcp.pop %v1136
  %v1184 = vmul.f32 1.0, %v1183
  %v1185 = vrcp.pop %v1137
  %v1186 = vmul.f32 1.0, %v1185
  %v1187 = vrcp.pop %v1138
  %v1188 = vmul.f32 1.0, %v1187
  %v1189 = vrcp.pop %v1139
  %v1190 = vmul.f32 1.0, %v1189
  %v1191 = vrcp.pop %v1140
  %v1192 = vmul.f32 1.0, %v1191
  %v1193 = vrcp.pop %v1141
  %v1194 = vmul.f32 1.0, %v1193
  %v1195 = vrcp.pop %v1142
  %v1196 = vmul.f32 1.0, %v1195
  %v1197 = vrcp.pop %v1143
  %v1198 = vmul.f32 1.0, %v1197
  %v1199 = vrcp.pop %v1144
  %v1200 = vmul.f32 1.0, %v1199
  %v1201 = vrcp.pop %v1145
  %v1202 = vmul.f32 1.0, %v1201
  %v1203 = vrcp.pop %v1146
  %v1204 = vmul.f32 1.0, %v1203
  %v1205 = vrcp.pop %v1147
  %v1206 = vmul.f32 1.0, %v1205
  %v1207 = vrcp.pop %v1148
  %v1208 = vmul.f32 1.0, %v1207
  %v1209 = vrcp.pop %v1149
  %v1210 = vmul.f32 1.0, %v1209
  %v1211 = vrcp.pop %v1150
  %v1212 = vmul.f32 1.0, %v1211
  %v1213 = vrcp.pop %v1151
  %v1214 = vmul.f32 1.0, %v1213
  %v1215 = vrcp.pop %v1152
  %v1216 = vmul.f32 1.0, %v1215
  %v1217 = vpack.c.bf16 %v1156, %v1154
  %v1218 = vpack.c.bf16 %v1160, %v1158
  %v1219 = vpack.c.bf16 %v1164, %v1162
  %v1220 = vpack.c.bf16 %v1168, %v1166
  %v1221 = vpack.c.bf16 %v1172, %v1170
  %v1222 = vpack.c.bf16 %v1176, %v1174
  %v1223 = vpack.c.bf16 %v1180, %v1178
  %v1224 = vpack.c.bf16 %v1184, %v1182
  %v1225 = vpack.c.bf16 %v1188, %v1186
  %v1226 = vpack.c.bf16 %v1192, %v1190
  %v1227 = vpack.c.bf16 %v1196, %v1194
  %v1228 = vpack.c.bf16 %v1200, %v1198
  %v1229 = vpack.c.bf16 %v1204, %v1202
  %v1230 = vpack.c.bf16 %v1208, %v1206
  %v1231 = vpack.c.bf16 %v1212, %v1210
  %v1232 = vpack.c.bf16 %v1216, %v1214
  %1233 = vmatprep.subr.bf16.mxu0 0
  %1234 = vmatpush1.bf16.msra.mxu0 %v1217
  %1235 = vmatprep.subr.bf16.mxu0 0
  %1236 = vmatpush1.bf16.msra.mxu0 %v1218
  %1237 = vmatprep.subr.bf16.mxu0 0
  %1238 = vmatpush1.bf16.msra.mxu0 %v1219
  %1239 = vmatprep.subr.bf16.mxu0 0
  %1240 = vmatpush1.bf16.msra.mxu0 %v1220
  %1241 = vmatprep.subr.bf16.mxu0 0
  %1242 = vmatpush1.bf16.msra.mxu0 %v1221
  %1243 = vmatprep.subr.bf16.mxu0 0
  %1244 = vmatpush1.bf16.msra.mxu0 %v1222
  %1245 = vmatprep.subr.bf16.mxu0 0
  %1246 = vmatpush1.bf16.msra.mxu0 %v1223
  %1247 = vmatprep.subr.bf16.mxu0 0
  %1248 = vmatpush1.bf16.msra.mxu0 %v1224
  %1249 = vmatprep.subr.bf16.mxu0 0
  %1250 = vmatpush1.bf16.msra.mxu0 %v1225
  %1251 = vmatprep.subr.bf16.mxu0 0
  %1252 = vmatpush1.bf16.msra.mxu0 %v1226
  %1253 = vmatprep.subr.bf16.mxu0 0
  %1254 = vmatpush1.bf16.msra.mxu0 %v1227
  %1255 = vmatprep.subr.bf16.mxu0 0
  %1256 = vmatpush1.bf16.msra.mxu0 %v1228
  %1257 = vmatprep.subr.bf16.mxu0 0
  %1258 = vmatpush1.bf16.msra.mxu0 %v1229
  %1259 = vmatprep.subr.bf16.mxu0 0
  %1260 = vmatpush1.bf16.msra.mxu0 %v1230
  %1261 = vmatprep.subr.bf16.mxu0 0
  %1262 = vmatpush1.bf16.msra.mxu0 %v1231
  %1263 = vmatprep.subr.bf16.mxu0 0
  %1264 = vmatpush1.bf16.msra.mxu0 %v1232
  %1265 = vmatprep.mubr.bf16.mxu0 %v200
  %1266 = vmatmul.mubr.bf16.gmra.mrb[0].mxu0 %v199
  %v1267 = vpop.f32.mrb[0].mxu0
  %v1268 = vadd.f32 0.0, %v1267
  %v1269 = vpop.f32.mrb[0].mxu0
  %v1270 = vpop.f32.mrb[0].mxu0
  %v1271 = vadd.f32 0.0, %v1270
  %v1272 = vpop.f32.mrb[0].mxu0
  %1273 = vmatprep.mubr.bf16.mxu0 %v202
  %1274 = vmatmul.mubr.bf16.gmra.mrb[0].mxu0 %v201
  %v1275 = vpop.f32.mrb[0].mxu0
  %v1276 = vadd.f32 0.0, %v1275
  %v1277 = vpop.f32.mrb[0].mxu0
  %v1278 = vpop.f32.mrb[0].mxu0
  %v1279 = vadd.f32 0.0, %v1278
  %v1280 = vpop.f32.mrb[0].mxu0
  %1281 = vmatprep.mubr.bf16.mxu0 %v204
  %1282 = vmatmul.mubr.bf16.gmra.mrb[0].mxu0 %v203
  %v1283 = vpop.f32.mrb[0].mxu0
  %v1284 = vadd.f32 0.0, %v1283
  %v1285 = vpop.f32.mrb[0].mxu0
  %v1286 = vpop.f32.mrb[0].mxu0
  %v1287 = vadd.f32 0.0, %v1286
  %v1288 = vpop.f32.mrb[0].mxu0
  %1289 = vmatprep.mubr.bf16.mxu0 %v206
  %1290 = vmatmul.mubr.bf16.gmra.mrb[0].mxu0 %v205
  %v1291 = vpop.f32.mrb[0].mxu0
  %v1292 = vadd.f32 0.0, %v1291
  %v1293 = vpop.f32.mrb[0].mxu0
  %v1294 = vpop.f32.mrb[0].mxu0
  %v1295 = vadd.f32 0.0, %v1294
  %v1296 = vpop.f32.mrb[0].mxu0
  %1297 = vmatprep.mubr.bf16.mxu0 %v208
  %1298 = vmatmul.mubr.bf16.gmra.mrb[0].mxu0 %v207
  %v1299 = vpop.f32.mrb[0].mxu0
  %v1300 = vadd.f32 0.0, %v1299
  %v1301 = vpop.f32.mrb[0].mxu0
  %v1302 = vpop.f32.mrb[0].mxu0
  %v1303 = vadd.f32 0.0, %v1302
  %v1304 = vpop.f32.mrb[0].mxu0
  %1305 = vmatprep.mubr.bf16.mxu0 %v210
  %1306 = vmatmul.mubr.bf16.gmra.mrb[0].mxu0 %v209
  %v1307 = vpop.f32.mrb[0].mxu0
  %v1308 = vadd.f32 0.0, %v1307
  %v1309 = vpop.f32.mrb[0].mxu0
  %v1310 = vpop.f32.mrb[0].mxu0
  %v1311 = vadd.f32 0.0, %v1310
  %v1312 = vpop.f32.mrb[0].mxu0
  %1313 = vmatprep.mubr.bf16.mxu0 %v212
  %1314 = vmatmul.mubr.bf16.gmra.mrb[0].mxu0 %v211
  %v1315 = vpop.f32.mrb[0].mxu0
  %v1316 = vadd.f32 0.0, %v1315
  %v1317 = vpop.f32.mrb[0].mxu0
  %v1318 = vpop.f32.mrb[0].mxu0
  %v1319 = vadd.f32 0.0, %v1318
  %v1320 = vpop.f32.mrb[0].mxu0
  %1321 = vmatprep.mubr.bf16.mxu0 %v214
  %1322 = vmatmul.mubr.bf16.gmra.mrb[0].mxu0 %v213
  %v1323 = vpop.f32.mrb[0].mxu0
  %v1324 = vadd.f32 0.0, %v1323
  %v1325 = vpop.f32.mrb[0].mxu0
  %v1326 = vpop.f32.mrb[0].mxu0
  %v1327 = vadd.f32 0.0, %v1326
  %v1328 = vpop.f32.mrb[0].mxu0
  %1329 = vmatprep.mubr.bf16.mxu0 %v216
  %1330 = vmatmul.mubr.bf16.gmra.mrb[0].mxu0 %v215
  %v1331 = vpop.f32.mrb[0].mxu0
  %v1332 = vadd.f32 0.0, %v1331
  %v1333 = vpop.f32.mrb[0].mxu0
  %v1334 = vpop.f32.mrb[0].mxu0
  %v1335 = vadd.f32 0.0, %v1334
  %v1336 = vpop.f32.mrb[0].mxu0
  %1337 = vmatprep.mubr.bf16.mxu0 %v218
  %1338 = vmatmul.mubr.bf16.gmra.mrb[0].mxu0 %v217
  %v1339 = vpop.f32.mrb[0].mxu0
  %v1340 = vadd.f32 0.0, %v1339
  %v1341 = vpop.f32.mrb[0].mxu0
  %v1342 = vpop.f32.mrb[0].mxu0
  %v1343 = vadd.f32 0.0, %v1342
  %v1344 = vpop.f32.mrb[0].mxu0
  %1345 = vmatprep.mubr.bf16.mxu0 %v220
  %1346 = vmatmul.mubr.bf16.gmra.mrb[0].mxu0 %v219
  %v1347 = vpop.f32.mrb[0].mxu0
  %v1348 = vadd.f32 0.0, %v1347
  %v1349 = vpop.f32.mrb[0].mxu0
  %v1350 = vpop.f32.mrb[0].mxu0
  %v1351 = vadd.f32 0.0, %v1350
  %v1352 = vpop.f32.mrb[0].mxu0
  %1353 = vmatprep.mubr.bf16.mxu0 %v222
  %1354 = vmatmul.mubr.bf16.gmra.mrb[0].mxu0 %v221
  %v1355 = vpop.f32.mrb[0].mxu0
  %v1356 = vadd.f32 0.0, %v1355
  %v1357 = vpop.f32.mrb[0].mxu0
  %v1358 = vpop.f32.mrb[0].mxu0
  %v1359 = vadd.f32 0.0, %v1358
  %v1360 = vpop.f32.mrb[0].mxu0
  %1361 = vmatprep.mubr.bf16.mxu0 %v224
  %1362 = vmatmul.mubr.bf16.gmra.mrb[0].mxu0 %v223
  %v1363 = vpop.f32.mrb[0].mxu0
  %v1364 = vadd.f32 0.0, %v1363
  %v1365 = vpop.f32.mrb[0].mxu0
  %v1366 = vpop.f32.mrb[0].mxu0
  %v1367 = vadd.f32 0.0, %v1366
  %v1368 = vpop.f32.mrb[0].mxu0
  %1369 = vmatprep.mubr.bf16.mxu0 %v226
  %1370 = vmatmul.mubr.bf16.gmra.mrb[0].mxu0 %v225
  %v1371 = vpop.f32.mrb[0].mxu0
  %v1372 = vadd.f32 0.0, %v1371
  %v1373 = vpop.f32.mrb[0].mxu0
  %v1374 = vpop.f32.mrb[0].mxu0
  %v1375 = vadd.f32 0.0, %v1374
  %v1376 = vpop.f32.mrb[0].mxu0
  %1377 = vmatprep.mubr.bf16.mxu0 %v228
  %1378 = vmatmul.mubr.bf16.gmra.mrb[0].mxu0 %v227
  %v1379 = vpop.f32.mrb[0].mxu0
  %v1380 = vadd.f32 0.0, %v1379
  %v1381 = vpop.f32.mrb[0].mxu0
  %v1382 = vpop.f32.mrb[0].mxu0
  %v1383 = vadd.f32 0.0, %v1382
  %v1384 = vpop.f32.mrb[0].mxu0
  %1385 = vmatprep.mubr.bf16.mxu0 %v230
  %1386 = vmatmul.mubr.bf16.gmra.mrb[0].mxu0 %v229
  %v1387 = vpop.f32.mrb[0].mxu0
  %v1388 = vadd.f32 0.0, %v1387
  %v1389 = vpop.f32.mrb[0].mxu0
  %v1390 = vpop.f32.mrb[0].mxu0
  %v1391 = vadd.f32 0.0, %v1390
  %v1392 = vpop.f32.mrb[0].mxu0
  %1393 = vdwg.mxu0
  %v1394 = vld [vmem:[%s5] sm:$0xf]
  %v1395 = vld [vmem:[%s5 + $0x4] sm:$0xf]
  %v1396 = vld [vmem:[%s5 + $0x8] sm:$0xf]
  %v1397 = vld [vmem:[%s5 + $0xc] sm:$0xf]
  %v1398 = vld [vmem:[%s5 + $0x10] sm:$0xf]
  %v1399 = vld [vmem:[%s5 + $0x14] sm:$0xf]
  %v1400 = vld [vmem:[%s5 + $0x18] sm:$0xf]
  %v1401 = vld [vmem:[%s5 + $0x1c] sm:$0xf]
  %v1402 = vld [vmem:[%s5 + $0x20] sm:$0xf]
  %v1403 = vld [vmem:[%s5 + $0x24] sm:$0xf]
  %v1404 = vld [vmem:[%s5 + $0x28] sm:$0xf]
  %v1405 = vld [vmem:[%s5 + $0x2c] sm:$0xf]
  %v1406 = vld [vmem:[%s5 + $0x30] sm:$0xf]
  %v1407 = vld [vmem:[%s5 + $0x34] sm:$0xf]
  %v1408 = vld [vmem:[%s5 + $0x38] sm:$0xf]
  %v1409 = vld [vmem:[%s5 + $0x3c] sm:$0xf]
  %v1410 = vpack.c.bf16 %v1271, %v1268
  %v1411 = vpack.c.bf16 %v1279, %v1276
  %v1412 = vpack.c.bf16 %v1287, %v1284
  %v1413 = vpack.c.bf16 %v1295, %v1292
  %v1414 = vpack.c.bf16 %v1303, %v1300
  %v1415 = vpack.c.bf16 %v1311, %v1308
  %v1416 = vpack.c.bf16 %v1319, %v1316
  %v1417 = vpack.c.bf16 %v1327, %v1324
  %v1418 = vpack.c.bf16 %v1335, %v1332
  %v1419 = vpack.c.bf16 %v1343, %v1340
  %v1420 = vpack.c.bf16 %v1351, %v1348
  %v1421 = vpack.c.bf16 %v1359, %v1356
  %v1422 = vpack.c.bf16 %v1367, %v1364
  %v1423 = vpack.c.bf16 %v1375, %v1372
  %v1424 = vpack.c.bf16 %v1383, %v1380
  %v1425 = vpack.c.bf16 %v1391, %v1388
  %v1426 = vld [vmem:[%s6] sm:$0xf]
  %v1427 = vld [vmem:[%s6 + $0x4] sm:$0xf]
  %v1428 = vld [vmem:[%s6 + $0x8] sm:$0xf]
  %v1429 = vld [vmem:[%s6 + $0xc] sm:$0xf]
  %v1430 = vld [vmem:[%s6 + $0x10] sm:$0xf]
  %v1431 = vld [vmem:[%s6 + $0x14] sm:$0xf]
  %v1432 = vld [vmem:[%s6 + $0x18] sm:$0xf]
  %v1433 = vld [vmem:[%s6 + $0x1c] sm:$0xf]
  %v1434 = vld [vmem:[%s6 + $0x20] sm:$0xf]
  %v1435 = vld [vmem:[%s6 + $0x24] sm:$0xf]
  %v1436 = vld [vmem:[%s6 + $0x28] sm:$0xf]
  %v1437 = vld [vmem:[%s6 + $0x2c] sm:$0xf]
  %v1438 = vld [vmem:[%s6 + $0x30] sm:$0xf]
  %v1439 = vld [vmem:[%s6 + $0x34] sm:$0xf]
  %v1440 = vld [vmem:[%s6 + $0x38] sm:$0xf]
  %v1441 = vld [vmem:[%s6 + $0x3c] sm:$0xf]
  %v1458 = vunpack.c.l.b16 %v1426
  %v1459 = vunpack.c.l.b16 %v1427
  %v1460 = vunpack.c.l.b16 %v1428
  %v1461 = vunpack.c.l.b16 %v1429
  %v1462 = vunpack.c.l.b16 %v1430
  %v1463 = vunpack.c.l.b16 %v1431
  %v1464 = vunpack.c.l.b16 %v1432
  %v1465 = vunpack.c.l.b16 %v1433
  %v1466 = vunpack.c.l.b16 %v1434
  %v1467 = vunpack.c.l.b16 %v1435
  %v1468 = vunpack.c.l.b16 %v1436
  %v1469 = vunpack.c.l.b16 %v1437
  %v1470 = vunpack.c.l.b16 %v1438
  %v1471 = vunpack.c.l.b16 %v1439
  %v1472 = vunpack.c.l.b16 %v1440
  %v1473 = vunpack.c.l.b16 %v1441
  %v1474 = vpack.c.b16 %v1459, %v1458
  %v1475 = vpack.c.b16 %v1461, %v1460
  %v1476 = vpack.c.b16 %v1463, %v1462
  %v1477 = vpack.c.b16 %v1465, %v1464
  %v1478 = vpack.c.b16 %v1467, %v1466
  %v1479 = vpack.c.b16 %v1469, %v1468
  %v1480 = vpack.c.b16 %v1471, %v1470
  %v1481 = vpack.c.b16 %v1473, %v1472
  %1490 = vmatprep.subr.bf16.mxu0 0
  %1491 = vmatpush1.bf16.msra.mxu0 %v1474
  %1492 = vmatprep.subr.bf16.mxu0 0
  %1493 = vmatpush1.bf16.msra.mxu0 %v1475
  %1494 = vmatprep.subr.bf16.mxu0 0
  %1495 = vmatpush1.bf16.msra.mxu0 %v1476
  %1496 = vmatprep.subr.bf16.mxu0 0
  %1497 = vmatpush1.bf16.msra.mxu0 %v1477
  %1498 = vmatprep.subr.bf16.mxu0 0
  %1499 = vmatpush1.bf16.msra.mxu0 %v1478
  %1500 = vmatprep.subr.bf16.mxu0 0
  %1501 = vmatpush1.bf16.msra.mxu0 %v1479
  %1502 = vmatprep.subr.bf16.mxu0 0
  %1503 = vmatpush1.bf16.msra.mxu0 %v1480
  %1504 = vmatprep.subr.bf16.mxu0 0
  %1505 = vmatpush1.bf16.msra.mxu0 %v1481
  %1506 = vmatprep.subr.bf16.mxu0 0
  %1507 = vmatpush1.bf16.msra.mxu0 0
  %1508 = vmatprep.subr.bf16.mxu0 0
  %1509 = vmatpush1.bf16.msra.mxu0 0
  %1510 = vmatprep.subr.bf16.mxu0 0
  %1511 = vmatpush1.bf16.msra.mxu0 0
  %1512 = vmatprep.subr.bf16.mxu0 0
  %1513 = vmatpush1.bf16.msra.mxu0 0
  %1514 = vmatprep.subr.bf16.mxu0 0
  %1515 = vmatpush1.bf16.msra.mxu0 0
  %1516 = vmatprep.subr.bf16.mxu0 0
  %1517 = vmatpush1.bf16.msra.mxu0 0
  %1518 = vmatprep.subr.bf16.mxu0 0
  %1519 = vmatpush1.bf16.msra.mxu0 0
  %1520 = vmatprep.subr.bf16.mxu0 0
  %1521 = vmatpush1.bf16.msra.mxu0 0
  %1522 = vmatprep.mubr.bf16.mxu0 0
  %1523 = vmatmul.mubr.bf16.gmra.mrb[0].mxu0 %v1410
  %v1524 = vpop.f32.mrb[0].mxu0
  %v1525 = vadd.f32 0.0, %v1524
  %v1526 = vpop.f32.mrb[0].mxu0
  %v1527 = vpop.f32.mrb[0].mxu0
  %v1528 = vadd.f32 0.0, %v1527
  %v1529 = vpop.f32.mrb[0].mxu0
  %1530 = vmatprep.mubr.bf16.mxu0 0
  %1531 = vmatmul.mubr.bf16.gmra.mrb[0].mxu0 %v1411
  %v1532 = vpop.f32.mrb[0].mxu0
  %v1533 = vadd.f32 0.0, %v1532
  %v1534 = vpop.f32.mrb[0].mxu0
  %v1535 = vpop.f32.mrb[0].mxu0
  %v1536 = vadd.f32 0.0, %v1535
  %v1537 = vpop.f32.mrb[0].mxu0
  %1538 = vmatprep.mubr.bf16.mxu0 0
  %1539 = vmatmul.mubr.bf16.gmra.mrb[0].mxu0 %v1412
  %v1540 = vpop.f32.mrb[0].mxu0
  %v1541 = vadd.f32 0.0, %v1540
  %v1542 = vpop.f32.mrb[0].mxu0
  %v1543 = vpop.f32.mrb[0].mxu0
  %v1544 = vadd.f32 0.0, %v1543
  %v1545 = vpop.f32.mrb[0].mxu0
  %1546 = vmatprep.mubr.bf16.mxu0 0
  %1547 = vmatmul.mubr.bf16.gmra.mrb[0].mxu0 %v1413
  %v1548 = vpop.f32.mrb[0].mxu0
  %v1549 = vadd.f32 0.0, %v1548
  %v1550 = vpop.f32.mrb[0].mxu0
  %v1551 = vpop.f32.mrb[0].mxu0
  %v1552 = vadd.f32 0.0, %v1551
  %v1553 = vpop.f32.mrb[0].mxu0
  %1554 = vmatprep.mubr.bf16.mxu0 0
  %1555 = vmatmul.mubr.bf16.gmra.mrb[0].mxu0 %v1414
  %v1556 = vpop.f32.mrb[0].mxu0
  %v1557 = vadd.f32 0.0, %v1556
  %v1558 = vpop.f32.mrb[0].mxu0
  %v1559 = vpop.f32.mrb[0].mxu0
  %v1560 = vadd.f32 0.0, %v1559
  %v1561 = vpop.f32.mrb[0].mxu0
  %1562 = vmatprep.mubr.bf16.mxu0 0
  %1563 = vmatmul.mubr.bf16.gmra.mrb[0].mxu0 %v1415
  %v1564 = vpop.f32.mrb[0].mxu0
  %v1565 = vadd.f32 0.0, %v1564
  %v1566 = vpop.f32.mrb[0].mxu0
  %v1567 = vpop.f32.mrb[0].mxu0
  %v1568 = vadd.f32 0.0, %v1567
  %v1569 = vpop.f32.mrb[0].mxu0
  %1570 = vmatprep.mubr.bf16.mxu0 0
  %1571 = vmatmul.mubr.bf16.gmra.mrb[0].mxu0 %v1416
  %v1572 = vpop.f32.mrb[0].mxu0
  %v1573 = vadd.f32 0.0, %v1572
  %v1574 = vpop.f32.mrb[0].mxu0
  %v1575 = vpop.f32.mrb[0].mxu0
  %v1576 = vadd.f32 0.0, %v1575
  %v1577 = vpop.f32.mrb[0].mxu0
  %1578 = vmatprep.mubr.bf16.mxu0 0
  %1579 = vmatmul.mubr.bf16.gmra.mrb[0].mxu0 %v1417
  %v1580 = vpop.f32.mrb[0].mxu0
  %v1581 = vadd.f32 0.0, %v1580
  %v1582 = vpop.f32.mrb[0].mxu0
  %v1583 = vpop.f32.mrb[0].mxu0
  %v1584 = vadd.f32 0.0, %v1583
  %v1585 = vpop.f32.mrb[0].mxu0
  %1586 = vmatprep.mubr.bf16.mxu0 0
  %1587 = vmatmul.mubr.bf16.gmra.mrb[0].mxu0 %v1418
  %v1588 = vpop.f32.mrb[0].mxu0
  %v1589 = vadd.f32 0.0, %v1588
  %v1590 = vpop.f32.mrb[0].mxu0
  %v1591 = vpop.f32.mrb[0].mxu0
  %v1592 = vadd.f32 0.0, %v1591
  %v1593 = vpop.f32.mrb[0].mxu0
  %1594 = vmatprep.mubr.bf16.mxu0 0
  %1595 = vmatmul.mubr.bf16.gmra.mrb[0].mxu0 %v1419
  %v1596 = vpop.f32.mrb[0].mxu0
  %v1597 = vadd.f32 0.0, %v1596
  %v1598 = vpop.f32.mrb[0].mxu0
  %v1599 = vpop.f32.mrb[0].mxu0
  %v1600 = vadd.f32 0.0, %v1599
  %v1601 = vpop.f32.mrb[0].mxu0
  %1602 = vmatprep.mubr.bf16.mxu0 0
  %1603 = vmatmul.mubr.bf16.gmra.mrb[0].mxu0 %v1420
  %v1604 = vpop.f32.mrb[0].mxu0
  %v1605 = vadd.f32 0.0, %v1604
  %v1606 = vpop.f32.mrb[0].mxu0
  %v1607 = vpop.f32.mrb[0].mxu0
  %v1608 = vadd.f32 0.0, %v1607
  %v1609 = vpop.f32.mrb[0].mxu0
  %1610 = vmatprep.mubr.bf16.mxu0 0
  %1611 = vmatmul.mubr.bf16.gmra.mrb[0].mxu0 %v1421
  %v1612 = vpop.f32.mrb[0].mxu0
  %v1613 = vadd.f32 0.0, %v1612
  %v1614 = vpop.f32.mrb[0].mxu0
  %v1615 = vpop.f32.mrb[0].mxu0
  %v1616 = vadd.f32 0.0, %v1615
  %v1617 = vpop.f32.mrb[0].mxu0
  %1618 = vmatprep.mubr.bf16.mxu0 0
  %1619 = vmatmul.mubr.bf16.gmra.mrb[0].mxu0 %v1422
  %v1620 = vpop.f32.mrb[0].mxu0
  %v1621 = vadd.f32 0.0, %v1620
  %v1622 = vpop.f32.mrb[0].mxu0
  %v1623 = vpop.f32.mrb[0].mxu0
  %v1624 = vadd.f32 0.0, %v1623
  %v1625 = vpop.f32.mrb[0].mxu0
  %1626 = vmatprep.mubr.bf16.mxu0 0
  %1627 = vmatmul.mubr.bf16.gmra.mrb[0].mxu0 %v1423
  %v1628 = vpop.f32.mrb[0].mxu0
  %v1629 = vadd.f32 0.0, %v1628
  %v1630 = vpop.f32.mrb[0].mxu0
  %v1631 = vpop.f32.mrb[0].mxu0
  %v1632 = vadd.f32 0.0, %v1631
  %v1633 = vpop.f32.mrb[0].mxu0
  %1634 = vmatprep.mubr.bf16.mxu0 0
  %1635 = vmatmul.mubr.bf16.gmra.mrb[0].mxu0 %v1424
  %v1636 = vpop.f32.mrb[0].mxu0
  %v1637 = vadd.f32 0.0, %v1636
  %v1638 = vpop.f32.mrb[0].mxu0
  %v1639 = vpop.f32.mrb[0].mxu0
  %v1640 = vadd.f32 0.0, %v1639
  %v1641 = vpop.f32.mrb[0].mxu0
  %1642 = vmatprep.mubr.bf16.mxu0 0
  %1643 = vmatmul.mubr.bf16.gmra.mrb[0].mxu0 %v1425
  %v1644 = vpop.f32.mrb[0].mxu0
  %v1645 = vadd.f32 0.0, %v1644
  %v1646 = vpop.f32.mrb[0].mxu0
  %v1647 = vpop.f32.mrb[0].mxu0
  %v1648 = vadd.f32 0.0, %v1647
  %v1649 = vpop.f32.mrb[0].mxu0
  %1650 = vdwg.mxu0
  %v1667 = vunpack.c.l.b16 %v1394
  %v1668 = vunpack.c.l.b16 %v1395
  %v1669 = vunpack.c.l.b16 %v1396
  %v1670 = vunpack.c.l.b16 %v1397
  %v1671 = vunpack.c.l.b16 %v1398
  %v1672 = vunpack.c.l.b16 %v1399
  %v1673 = vunpack.c.l.b16 %v1400
  %v1674 = vunpack.c.l.b16 %v1401
  %v1675 = vunpack.c.l.b16 %v1402
  %v1676 = vunpack.c.l.b16 %v1403
  %v1677 = vunpack.c.l.b16 %v1404
  %v1678 = vunpack.c.l.b16 %v1405
  %v1679 = vunpack.c.l.b16 %v1406
  %v1680 = vunpack.c.l.b16 %v1407
  %v1681 = vunpack.c.l.b16 %v1408
  %v1682 = vunpack.c.l.b16 %v1409
  %v1683 = vpack.c.b16 %v1668, %v1667
  %v1684 = vpack.c.b16 %v1670, %v1669
  %v1685 = vpack.c.b16 %v1672, %v1671
  %v1686 = vpack.c.b16 %v1674, %v1673
  %v1687 = vpack.c.b16 %v1676, %v1675
  %v1688 = vpack.c.b16 %v1678, %v1677
  %v1689 = vpack.c.b16 %v1680, %v1679
  %v1690 = vpack.c.b16 %v1682, %v1681
  %1699 = vmatprep.subr.bf16.mxu0 0
  %1700 = vmatpush1.bf16.msra.mxu0 %v1683
  %1701 = vmatprep.subr.bf16.mxu0 0
  %1702 = vmatpush1.bf16.msra.mxu0 %v1684
  %1703 = vmatprep.subr.bf16.mxu0 0
  %1704 = vmatpush1.bf16.msra.mxu0 %v1685
  %1705 = vmatprep.subr.bf16.mxu0 0
  %1706 = vmatpush1.bf16.msra.mxu0 %v1686
  %1707 = vmatprep.subr.bf16.mxu0 0
  %1708 = vmatpush1.bf16.msra.mxu0 %v1687
  %1709 = vmatprep.subr.bf16.mxu0 0
  %1710 = vmatpush1.bf16.msra.mxu0 %v1688
  %1711 = vmatprep.subr.bf16.mxu0 0
  %1712 = vmatpush1.bf16.msra.mxu0 %v1689
  %1713 = vmatprep.subr.bf16.mxu0 0
  %1714 = vmatpush1.bf16.msra.mxu0 %v1690
  %1715 = vmatprep.subr.bf16.mxu0 0
  %1716 = vmatpush1.bf16.msra.mxu0 0
  %1717 = vmatprep.subr.bf16.mxu0 0
  %1718 = vmatpush1.bf16.msra.mxu0 0
  %1719 = vmatprep.subr.bf16.mxu0 0
  %1720 = vmatpush1.bf16.msra.mxu0 0
  %1721 = vmatprep.subr.bf16.mxu0 0
  %1722 = vmatpush1.bf16.msra.mxu0 0
  %1723 = vmatprep.subr.bf16.mxu0 0
  %1724 = vmatpush1.bf16.msra.mxu0 0
  %1725 = vmatprep.subr.bf16.mxu0 0
  %1726 = vmatpush1.bf16.msra.mxu0 0
  %1727 = vmatprep.subr.bf16.mxu0 0
  %1728 = vmatpush1.bf16.msra.mxu0 0
  %1729 = vmatprep.subr.bf16.mxu0 0
  %1730 = vmatpush1.bf16.msra.mxu0 0
  %1731 = vmatprep.mubr.bf16.mxu0 0
  %1732 = vmatmul.mubr.bf16.gmra.mrb[0].mxu0 %v1217
  %v1733 = vpop.f32.mrb[0].mxu0
  %v1734 = vadd.f32 %v1525, %v1733
  %v1735 = vpop.f32.mrb[0].mxu0
  %v1736 = vpop.f32.mrb[0].mxu0
  %v1737 = vadd.f32 %v1528, %v1736
  %v1738 = vpop.f32.mrb[0].mxu0
  %1739 = vmatprep.mubr.bf16.mxu0 0
  %1740 = vmatmul.mubr.bf16.gmra.mrb[0].mxu0 %v1218
  %v1741 = vpop.f32.mrb[0].mxu0
  %v1742 = vadd.f32 %v1533, %v1741
  %v1743 = vpop.f32.mrb[0].mxu0
  %v1744 = vpop.f32.mrb[0].mxu0
  %v1745 = vadd.f32 %v1536, %v1744
  %v1746 = vpop.f32.mrb[0].mxu0
  %1747 = vmatprep.mubr.bf16.mxu0 0
  %1748 = vmatmul.mubr.bf16.gmra.mrb[0].mxu0 %v1219
  %v1749 = vpop.f32.mrb[0].mxu0
  %v1750 = vadd.f32 %v1541, %v1749
  %v1751 = vpop.f32.mrb[0].mxu0
  %v1752 = vpop.f32.mrb[0].mxu0
  %v1753 = vadd.f32 %v1544, %v1752
  %v1754 = vpop.f32.mrb[0].mxu0
  %1755 = vmatprep.mubr.bf16.mxu0 0
  %1756 = vmatmul.mubr.bf16.gmra.mrb[0].mxu0 %v1220
  %v1757 = vpop.f32.mrb[0].mxu0
  %v1758 = vadd.f32 %v1549, %v1757
  %v1759 = vpop.f32.mrb[0].mxu0
  %v1760 = vpop.f32.mrb[0].mxu0
  %v1761 = vadd.f32 %v1552, %v1760
  %v1762 = vpop.f32.mrb[0].mxu0
  %1763 = vmatprep.mubr.bf16.mxu0 0
  %1764 = vmatmul.mubr.bf16.gmra.mrb[0].mxu0 %v1221
  %v1765 = vpop.f32.mrb[0].mxu0
  %v1766 = vadd.f32 %v1557, %v1765
  %v1767 = vpop.f32.mrb[0].mxu0
  %v1768 = vpop.f32.mrb[0].mxu0
  %v1769 = vadd.f32 %v1560, %v1768
  %v1770 = vpop.f32.mrb[0].mxu0
  %1771 = vmatprep.mubr.bf16.mxu0 0
  %1772 = vmatmul.mubr.bf16.gmra.mrb[0].mxu0 %v1222
  %v1773 = vpop.f32.mrb[0].mxu0
  %v1774 = vadd.f32 %v1565, %v1773
  %v1775 = vpop.f32.mrb[0].mxu0
  %v1776 = vpop.f32.mrb[0].mxu0
  %v1777 = vadd.f32 %v1568, %v1776
  %v1778 = vpop.f32.mrb[0].mxu0
  %1779 = vmatprep.mubr.bf16.mxu0 0
  %1780 = vmatmul.mubr.bf16.gmra.mrb[0].mxu0 %v1223
  %v1781 = vpop.f32.mrb[0].mxu0
  %v1782 = vadd.f32 %v1573, %v1781
  %v1783 = vpop.f32.mrb[0].mxu0
  %v1784 = vpop.f32.mrb[0].mxu0
  %v1785 = vadd.f32 %v1576, %v1784
  %v1786 = vpop.f32.mrb[0].mxu0
  %1787 = vmatprep.mubr.bf16.mxu0 0
  %1788 = vmatmul.mubr.bf16.gmra.mrb[0].mxu0 %v1224
  %v1789 = vpop.f32.mrb[0].mxu0
  %v1790 = vadd.f32 %v1581, %v1789
  %v1791 = vpop.f32.mrb[0].mxu0
  %v1792 = vpop.f32.mrb[0].mxu0
  %v1793 = vadd.f32 %v1584, %v1792
  %v1794 = vpop.f32.mrb[0].mxu0
  %1795 = vmatprep.mubr.bf16.mxu0 0
  %1796 = vmatmul.mubr.bf16.gmra.mrb[0].mxu0 %v1225
  %v1797 = vpop.f32.mrb[0].mxu0
  %v1798 = vadd.f32 %v1589, %v1797
  %v1799 = vpop.f32.mrb[0].mxu0
  %v1800 = vpop.f32.mrb[0].mxu0
  %v1801 = vadd.f32 %v1592, %v1800
  %v1802 = vpop.f32.mrb[0].mxu0
  %1803 = vmatprep.mubr.bf16.mxu0 0
  %1804 = vmatmul.mubr.bf16.gmra.mrb[0].mxu0 %v1226
  %v1805 = vpop.f32.mrb[0].mxu0
  %v1806 = vadd.f32 %v1597, %v1805
  %v1807 = vpop.f32.mrb[0].mxu0
  %v1808 = vpop.f32.mrb[0].mxu0
  %v1809 = vadd.f32 %v1600, %v1808
  %v1810 = vpop.f32.mrb[0].mxu0
  %1811 = vmatprep.mubr.bf16.mxu0 0
  %1812 = vmatmul.mubr.bf16.gmra.mrb[0].mxu0 %v1227
  %v1813 = vpop.f32.mrb[0].mxu0
  %v1814 = vadd.f32 %v1605, %v1813
  %v1815 = vpop.f32.mrb[0].mxu0
  %v1816 = vpop.f32.mrb[0].mxu0
  %v1817 = vadd.f32 %v1608, %v1816
  %v1818 = vpop.f32.mrb[0].mxu0
  %1819 = vmatprep.mubr.bf16.mxu0 0
  %1820 = vmatmul.mubr.bf16.gmra.mrb[0].mxu0 %v1228
  %v1821 = vpop.f32.mrb[0].mxu0
  %v1822 = vadd.f32 %v1613, %v1821
  %v1823 = vpop.f32.mrb[0].mxu0
  %v1824 = vpop.f32.mrb[0].mxu0
  %v1825 = vadd.f32 %v1616, %v1824
  %v1826 = vpop.f32.mrb[0].mxu0
  %1827 = vmatprep.mubr.bf16.mxu0 0
  %1828 = vmatmul.mubr.bf16.gmra.mrb[0].mxu0 %v1229
  %v1829 = vpop.f32.mrb[0].mxu0
  %v1830 = vadd.f32 %v1621, %v1829
  %v1831 = vpop.f32.mrb[0].mxu0
  %v1832 = vpop.f32.mrb[0].mxu0
  %v1833 = vadd.f32 %v1624, %v1832
  %v1834 = vpop.f32.mrb[0].mxu0
  %1835 = vmatprep.mubr.bf16.mxu0 0
  %1836 = vmatmul.mubr.bf16.gmra.mrb[0].mxu0 %v1230
  %v1837 = vpop.f32.mrb[0].mxu0
  %v1838 = vadd.f32 %v1629, %v1837
  %v1839 = vpop.f32.mrb[0].mxu0
  %v1840 = vpop.f32.mrb[0].mxu0
  %v1841 = vadd.f32 %v1632, %v1840
  %v1842 = vpop.f32.mrb[0].mxu0
  %1843 = vmatprep.mubr.bf16.mxu0 0
  %1844 = vmatmul.mubr.bf16.gmra.mrb[0].mxu0 %v1231
  %v1845 = vpop.f32.mrb[0].mxu0
  %v1846 = vadd.f32 %v1637, %v1845
  %v1847 = vpop.f32.mrb[0].mxu0
  %v1848 = vpop.f32.mrb[0].mxu0
  %v1849 = vadd.f32 %v1640, %v1848
  %v1850 = vpop.f32.mrb[0].mxu0
  %1851 = vmatprep.mubr.bf16.mxu0 0
  %1852 = vmatmul.mubr.bf16.gmra.mrb[0].mxu0 %v1232
  %v1853 = vpop.f32.mrb[0].mxu0
  %v1854 = vadd.f32 %v1645, %v1853
  %v1855 = vpop.f32.mrb[0].mxu0
  %v1856 = vpop.f32.mrb[0].mxu0
  %v1857 = vadd.f32 %v1648, %v1856
  %v1858 = vpop.f32.mrb[0].mxu0
  %1859 = vdwg.mxu0
  %v1860 = vld [vmem:[%s7] sm:$0x1]
  %v1862 = vlaneseq
  %v1863 = vshrl.u32 %v1862, 7
  %v1864 = vsub.s32 0, %v1863
  %v1865 = vrot.slane %v1860, %v1864
  %v1867 = vadd.f32 %v1734, %v1865
  %v1868 = vadd.f32 %v1737, %v1865
  %v1869 = vadd.f32 %v1742, %v1865
  %v1870 = vadd.f32 %v1745, %v1865
  %v1871 = vadd.f32 %v1750, %v1865
  %v1872 = vadd.f32 %v1753, %v1865
  %v1873 = vadd.f32 %v1758, %v1865
  %v1874 = vadd.f32 %v1761, %v1865
  %v1875 = vadd.f32 %v1766, %v1865
  %v1876 = vadd.f32 %v1769, %v1865
  %v1877 = vadd.f32 %v1774, %v1865
  %v1878 = vadd.f32 %v1777, %v1865
  %v1879 = vadd.f32 %v1782, %v1865
  %v1880 = vadd.f32 %v1785, %v1865
  %v1881 = vadd.f32 %v1790, %v1865
  %v1882 = vadd.f32 %v1793, %v1865
  %v1883 = vadd.f32 %v1798, %v1865
  %v1884 = vadd.f32 %v1801, %v1865
  %v1885 = vadd.f32 %v1806, %v1865
  %v1886 = vadd.f32 %v1809, %v1865
  %v1887 = vadd.f32 %v1814, %v1865
  %v1888 = vadd.f32 %v1817, %v1865
  %v1889 = vadd.f32 %v1822, %v1865
  %v1890 = vadd.f32 %v1825, %v1865
  %v1891 = vadd.f32 %v1830, %v1865
  %v1892 = vadd.f32 %v1833, %v1865
  %v1893 = vadd.f32 %v1838, %v1865
  %v1894 = vadd.f32 %v1841, %v1865
  %v1895 = vadd.f32 %v1846, %v1865
  %v1896 = vadd.f32 %v1849, %v1865
  %v1897 = vadd.f32 %v1854, %v1865
  %v1898 = vadd.f32 %v1857, %v1865
  %v1899 = vxor.u32 %v1867, 2147483648
  %v1900 = vxor.u32 %v1868, 2147483648
  %v1901 = vxor.u32 %v1869, 2147483648
  %v1902 = vxor.u32 %v1870, 2147483648
  %v1903 = vxor.u32 %v1871, 2147483648
  %v1904 = vxor.u32 %v1872, 2147483648
  %v1905 = vxor.u32 %v1873, 2147483648
  %v1906 = vxor.u32 %v1874, 2147483648
  %v1907 = vxor.u32 %v1875, 2147483648
  %v1908 = vxor.u32 %v1876, 2147483648
  %v1909 = vxor.u32 %v1877, 2147483648
  %v1910 = vxor.u32 %v1878, 2147483648
  %v1911 = vxor.u32 %v1879, 2147483648
  %v1912 = vxor.u32 %v1880, 2147483648
  %v1913 = vxor.u32 %v1881, 2147483648
  %v1914 = vxor.u32 %v1882, 2147483648
  %v1915 = vxor.u32 %v1883, 2147483648
  %v1916 = vxor.u32 %v1884, 2147483648
  %v1917 = vxor.u32 %v1885, 2147483648
  %v1918 = vxor.u32 %v1886, 2147483648
  %v1919 = vxor.u32 %v1887, 2147483648
  %v1920 = vxor.u32 %v1888, 2147483648
  %v1921 = vxor.u32 %v1889, 2147483648
  %v1922 = vxor.u32 %v1890, 2147483648
  %v1923 = vxor.u32 %v1891, 2147483648
  %v1924 = vxor.u32 %v1892, 2147483648
  %v1925 = vxor.u32 %v1893, 2147483648
  %v1926 = vxor.u32 %v1894, 2147483648
  %v1927 = vxor.u32 %v1895, 2147483648
  %v1928 = vxor.u32 %v1896, 2147483648
  %v1929 = vxor.u32 %v1897, 2147483648
  %v1930 = vxor.u32 %v1898, 2147483648
  %v1931 = vmul.f32 %v1899, 1.442695
  %v1932 = vpow.pop %v1931
  %v1933 = vmul.f32 %v1900, 1.442695
  %v1934 = vpow.pop %v1933
  %v1935 = vmul.f32 %v1901, 1.442695
  %v1936 = vpow.pop %v1935
  %v1937 = vmul.f32 %v1902, 1.442695
  %v1938 = vpow.pop %v1937
  %v1939 = vmul.f32 %v1903, 1.442695
  %v1940 = vpow.pop %v1939
  %v1941 = vmul.f32 %v1904, 1.442695
  %v1942 = vpow.pop %v1941
  %v1943 = vmul.f32 %v1905, 1.442695
  %v1944 = vpow.pop %v1943
  %v1945 = vmul.f32 %v1906, 1.442695
  %v1946 = vpow.pop %v1945
  %v1947 = vmul.f32 %v1907, 1.442695
  %v1948 = vpow.pop %v1947
  %v1949 = vmul.f32 %v1908, 1.442695
  %v1950 = vpow.pop %v1949
  %v1951 = vmul.f32 %v1909, 1.442695
  %v1952 = vpow.pop %v1951
  %v1953 = vmul.f32 %v1910, 1.442695
  %v1954 = vpow.pop %v1953
  %v1955 = vmul.f32 %v1911, 1.442695
  %v1956 = vpow.pop %v1955
  %v1957 = vmul.f32 %v1912, 1.442695
  %v1958 = vpow.pop %v1957
  %v1959 = vmul.f32 %v1913, 1.442695
  %v1960 = vpow.pop %v1959
  %v1961 = vmul.f32 %v1914, 1.442695
  %v1962 = vpow.pop %v1961
  %v1963 = vmul.f32 %v1915, 1.442695
  %v1964 = vpow.pop %v1963
  %v1965 = vmul.f32 %v1916, 1.442695
  %v1966 = vpow.pop %v1965
  %v1967 = vmul.f32 %v1917, 1.442695
  %v1968 = vpow.pop %v1967
  %v1969 = vmul.f32 %v1918, 1.442695
  %v1970 = vpow.pop %v1969
  %v1971 = vmul.f32 %v1919, 1.442695
  %v1972 = vpow.pop %v1971
  %v1973 = vmul.f32 %v1920, 1.442695
  %v1974 = vpow.pop %v1973
  %v1975 = vmul.f32 %v1921, 1.442695
  %v1976 = vpow.pop %v1975
  %v1977 = vmul.f32 %v1922, 1.442695
  %v1978 = vpow.pop %v1977
  %v1979 = vmul.f32 %v1923, 1.442695
  %v1980 = vpow.pop %v1979
  %v1981 = vmul.f32 %v1924, 1.442695
  %v1982 = vpow.pop %v1981
  %v1983 = vmul.f32 %v1925, 1.442695
  %v1984 = vpow.pop %v1983
  %v1985 = vmul.f32 %v1926, 1.442695
  %v1986 = vpow.pop %v1985
  %v1987 = vmul.f32 %v1927, 1.442695
  %v1988 = vpow.pop %v1987
  %v1989 = vmul.f32 %v1928, 1.442695
  %v1990 = vpow.pop %v1989
  %v1991 = vmul.f32 %v1929, 1.442695
  %v1992 = vpow.pop %v1991
  %v1993 = vmul.f32 %v1930, 1.442695
  %v1994 = vpow.pop %v1993
  %v1995 = vadd.f32 %v1932, 1.0
  %v1996 = vadd.f32 %v1934, 1.0
  %v1997 = vadd.f32 %v1936, 1.0
  %v1998 = vadd.f32 %v1938, 1.0
  %v1999 = vadd.f32 %v1940, 1.0
  %v2000 = vadd.f32 %v1942, 1.0
  %v2001 = vadd.f32 %v1944, 1.0
  %v2002 = vadd.f32 %v1946, 1.0
  %v2003 = vadd.f32 %v1948, 1.0
  %v2004 = vadd.f32 %v1950, 1.0
  %v2005 = vadd.f32 %v1952, 1.0
  %v2006 = vadd.f32 %v1954, 1.0
  %v2007 = vadd.f32 %v1956, 1.0
  %v2008 = vadd.f32 %v1958, 1.0
  %v2009 = vadd.f32 %v1960, 1.0
  %v2010 = vadd.f32 %v1962, 1.0
  %v2011 = vadd.f32 %v1964, 1.0
  %v2012 = vadd.f32 %v1966, 1.0
  %v2013 = vadd.f32 %v1968, 1.0
  %v2014 = vadd.f32 %v1970, 1.0
  %v2015 = vadd.f32 %v1972, 1.0
  %v2016 = vadd.f32 %v1974, 1.0
  %v2017 = vadd.f32 %v1976, 1.0
  %v2018 = vadd.f32 %v1978, 1.0
  %v2019 = vadd.f32 %v1980, 1.0
  %v2020 = vadd.f32 %v1982, 1.0
  %v2021 = vadd.f32 %v1984, 1.0
  %v2022 = vadd.f32 %v1986, 1.0
  %v2023 = vadd.f32 %v1988, 1.0
  %v2024 = vadd.f32 %v1990, 1.0
  %v2025 = vadd.f32 %v1992, 1.0
  %v2026 = vadd.f32 %v1994, 1.0
  %v2027 = vrcp.pop %v1995
  %v2028 = vmul.f32 1.0, %v2027
  %v2029 = vrcp.pop %v1996
  %v2030 = vmul.f32 1.0, %v2029
  %v2031 = vrcp.pop %v1997
  %v2032 = vmul.f32 1.0, %v2031
  %v2033 = vrcp.pop %v1998
  %v2034 = vmul.f32 1.0, %v2033
  %v2035 = vrcp.pop %v1999
  %v2036 = vmul.f32 1.0, %v2035
  %v2037 = vrcp.pop %v2000
  %v2038 = vmul.f32 1.0, %v2037
  %v2039 = vrcp.pop %v2001
  %v2040 = vmul.f32 1.0, %v2039
  %v2041 = vrcp.pop %v2002
  %v2042 = vmul.f32 1.0, %v2041
  %v2043 = vrcp.pop %v2003
  %v2044 = vmul.f32 1.0, %v2043
  %v2045 = vrcp.pop %v2004
  %v2046 = vmul.f32 1.0, %v2045
  %v2047 = vrcp.pop %v2005
  %v2048 = vmul.f32 1.0, %v2047
  %v2049 = vrcp.pop %v2006
  %v2050 = vmul.f32 1.0, %v2049
  %v2051 = vrcp.pop %v2007
  %v2052 = vmul.f32 1.0, %v2051
  %v2053 = vrcp.pop %v2008
  %v2054 = vmul.f32 1.0, %v2053
  %v2055 = vrcp.pop %v2009
  %v2056 = vmul.f32 1.0, %v2055
  %v2057 = vrcp.pop %v2010
  %v2058 = vmul.f32 1.0, %v2057
  %v2059 = vrcp.pop %v2011
  %v2060 = vmul.f32 1.0, %v2059
  %v2061 = vrcp.pop %v2012
  %v2062 = vmul.f32 1.0, %v2061
  %v2063 = vrcp.pop %v2013
  %v2064 = vmul.f32 1.0, %v2063
  %v2065 = vrcp.pop %v2014
  %v2066 = vmul.f32 1.0, %v2065
  %v2067 = vrcp.pop %v2015
  %v2068 = vmul.f32 1.0, %v2067
  %v2069 = vrcp.pop %v2016
  %v2070 = vmul.f32 1.0, %v2069
  %v2071 = vrcp.pop %v2017
  %v2072 = vmul.f32 1.0, %v2071
  %v2073 = vrcp.pop %v2018
  %v2074 = vmul.f32 1.0, %v2073
  %v2075 = vrcp.pop %v2019
  %v2076 = vmul.f32 1.0, %v2075
  %v2077 = vrcp.pop %v2020
  %v2078 = vmul.f32 1.0, %v2077
  %v2079 = vrcp.pop %v2021
  %v2080 = vmul.f32 1.0, %v2079
  %v2081 = vrcp.pop %v2022
  %v2082 = vmul.f32 1.0, %v2081
  %v2083 = vrcp.pop %v2023
  %v2084 = vmul.f32 1.0, %v2083
  %v2085 = vrcp.pop %v2024
  %v2086 = vmul.f32 1.0, %v2085
  %v2087 = vrcp.pop %v2025
  %v2088 = vmul.f32 1.0, %v2087
  %v2089 = vrcp.pop %v2026
  %v2090 = vmul.f32 1.0, %v2089
  %v2091 = vpack.c.bf16 %v2030, %v2028
  %v2092 = vpack.c.bf16 %v2034, %v2032
  %v2093 = vpack.c.bf16 %v2038, %v2036
  %v2094 = vpack.c.bf16 %v2042, %v2040
  %v2095 = vpack.c.bf16 %v2046, %v2044
  %v2096 = vpack.c.bf16 %v2050, %v2048
  %v2097 = vpack.c.bf16 %v2054, %v2052
  %v2098 = vpack.c.bf16 %v2058, %v2056
  %v2099 = vpack.c.bf16 %v2062, %v2060
  %v2100 = vpack.c.bf16 %v2066, %v2064
  %v2101 = vpack.c.bf16 %v2070, %v2068
  %v2102 = vpack.c.bf16 %v2074, %v2072
  %v2103 = vpack.c.bf16 %v2078, %v2076
  %v2104 = vpack.c.bf16 %v2082, %v2080
  %v2105 = vpack.c.bf16 %v2086, %v2084
  %v2106 = vpack.c.bf16 %v2090, %v2088
  %2107 = vmatprep.subr.bf16.mxu0 0
  %2108 = vmatpush1.bf16.msra.mxu0 %v2091
  %2109 = vmatprep.subr.bf16.mxu0 0
  %2110 = vmatpush1.bf16.msra.mxu0 %v2092
  %2111 = vmatprep.subr.bf16.mxu0 0
  %2112 = vmatpush1.bf16.msra.mxu0 %v2093
  %2113 = vmatprep.subr.bf16.mxu0 0
  %2114 = vmatpush1.bf16.msra.mxu0 %v2094
  %2115 = vmatprep.subr.bf16.mxu0 0
  %2116 = vmatpush1.bf16.msra.mxu0 %v2095
  %2117 = vmatprep.subr.bf16.mxu0 0
  %2118 = vmatpush1.bf16.msra.mxu0 %v2096
  %2119 = vmatprep.subr.bf16.mxu0 0
  %2120 = vmatpush1.bf16.msra.mxu0 %v2097
  %2121 = vmatprep.subr.bf16.mxu0 0
  %2122 = vmatpush1.bf16.msra.mxu0 %v2098
  %2123 = vmatprep.subr.bf16.mxu0 0
  %2124 = vmatpush1.bf16.msra.mxu0 %v2099
  %2125 = vmatprep.subr.bf16.mxu0 0
  %2126 = vmatpush1.bf16.msra.mxu0 %v2100
  %2127 = vmatprep.subr.bf16.mxu0 0
  %2128 = vmatpush1.bf16.msra.mxu0 %v2101
  %2129 = vmatprep.subr.bf16.mxu0 0
  %2130 = vmatpush1.bf16.msra.mxu0 %v2102
  %2131 = vmatprep.subr.bf16.mxu0 0
  %2132 = vmatpush1.bf16.msra.mxu0 %v2103
  %2133 = vmatprep.subr.bf16.mxu0 0
  %2134 = vmatpush1.bf16.msra.mxu0 %v2104
  %2135 = vmatprep.subr.bf16.mxu0 0
  %2136 = vmatpush1.bf16.msra.mxu0 %v2105
  %2137 = vmatprep.subr.bf16.mxu0 0
  %2138 = vmatpush1.bf16.msra.mxu0 %v2106
  %2139 = vmatprep.mubr.bf16.mxu0 %v200
  %2140 = vmatmul.mubr.bf16.gmra.mrb[0].mxu0 %v199
  %v2141 = vpop.f32.mrb[0].mxu0
  %v2142 = vadd.f32 0.0, %v2141
  %v2143 = vpop.f32.mrb[0].mxu0
  %v2144 = vpop.f32.mrb[0].mxu0
  %v2145 = vadd.f32 0.0, %v2144
  %v2146 = vpop.f32.mrb[0].mxu0
  %2147 = vmatprep.mubr.bf16.mxu0 %v202
  %2148 = vmatmul.mubr.bf16.gmra.mrb[0].mxu0 %v201
  %v2149 = vpop.f32.mrb[0].mxu0
  %v2150 = vadd.f32 0.0, %v2149
  %v2151 = vpop.f32.mrb[0].mxu0
  %v2152 = vpop.f32.mrb[0].mxu0
  %v2153 = vadd.f32 0.0, %v2152
  %v2154 = vpop.f32.mrb[0].mxu0
  %2155 = vmatprep.mubr.bf16.mxu0 %v204
  %2156 = vmatmul.mubr.bf16.gmra.mrb[0].mxu0 %v203
  %v2157 = vpop.f32.mrb[0].mxu0
  %v2158 = vadd.f32 0.0, %v2157
  %v2159 = vpop.f32.mrb[0].mxu0
  %v2160 = vpop.f32.mrb[0].mxu0
  %v2161 = vadd.f32 0.0, %v2160
  %v2162 = vpop.f32.mrb[0].mxu0
  %2163 = vmatprep.mubr.bf16.mxu0 %v206
  %2164 = vmatmul.mubr.bf16.gmra.mrb[0].mxu0 %v205
  %v2165 = vpop.f32.mrb[0].mxu0
  %v2166 = vadd.f32 0.0, %v2165
  %v2167 = vpop.f32.mrb[0].mxu0
  %v2168 = vpop.f32.mrb[0].mxu0
  %v2169 = vadd.f32 0.0, %v2168
  %v2170 = vpop.f32.mrb[0].mxu0
  %2171 = vmatprep.mubr.bf16.mxu0 %v208
  %2172 = vmatmul.mubr.bf16.gmra.mrb[0].mxu0 %v207
  %v2173 = vpop.f32.mrb[0].mxu0
  %v2174 = vadd.f32 0.0, %v2173
  %v2175 = vpop.f32.mrb[0].mxu0
  %v2176 = vpop.f32.mrb[0].mxu0
  %v2177 = vadd.f32 0.0, %v2176
  %v2178 = vpop.f32.mrb[0].mxu0
  %2179 = vmatprep.mubr.bf16.mxu0 %v210
  %2180 = vmatmul.mubr.bf16.gmra.mrb[0].mxu0 %v209
  %v2181 = vpop.f32.mrb[0].mxu0
  %v2182 = vadd.f32 0.0, %v2181
  %v2183 = vpop.f32.mrb[0].mxu0
  %v2184 = vpop.f32.mrb[0].mxu0
  %v2185 = vadd.f32 0.0, %v2184
  %v2186 = vpop.f32.mrb[0].mxu0
  %2187 = vmatprep.mubr.bf16.mxu0 %v212
  %2188 = vmatmul.mubr.bf16.gmra.mrb[0].mxu0 %v211
  %v2189 = vpop.f32.mrb[0].mxu0
  %v2190 = vadd.f32 0.0, %v2189
  %v2191 = vpop.f32.mrb[0].mxu0
  %v2192 = vpop.f32.mrb[0].mxu0
  %v2193 = vadd.f32 0.0, %v2192
  %v2194 = vpop.f32.mrb[0].mxu0
  %2195 = vmatprep.mubr.bf16.mxu0 %v214
  %2196 = vmatmul.mubr.bf16.gmra.mrb[0].mxu0 %v213
  %v2197 = vpop.f32.mrb[0].mxu0
  %v2198 = vadd.f32 0.0, %v2197
  %v2199 = vpop.f32.mrb[0].mxu0
  %v2200 = vpop.f32.mrb[0].mxu0
  %v2201 = vadd.f32 0.0, %v2200
  %v2202 = vpop.f32.mrb[0].mxu0
  %2203 = vmatprep.mubr.bf16.mxu0 %v216
  %2204 = vmatmul.mubr.bf16.gmra.mrb[0].mxu0 %v215
  %v2205 = vpop.f32.mrb[0].mxu0
  %v2206 = vadd.f32 0.0, %v2205
  %v2207 = vpop.f32.mrb[0].mxu0
  %v2208 = vpop.f32.mrb[0].mxu0
  %v2209 = vadd.f32 0.0, %v2208
  %v2210 = vpop.f32.mrb[0].mxu0
  %2211 = vmatprep.mubr.bf16.mxu0 %v218
  %2212 = vmatmul.mubr.bf16.gmra.mrb[0].mxu0 %v217
  %v2213 = vpop.f32.mrb[0].mxu0
  %v2214 = vadd.f32 0.0, %v2213
  %v2215 = vpop.f32.mrb[0].mxu0
  %v2216 = vpop.f32.mrb[0].mxu0
  %v2217 = vadd.f32 0.0, %v2216
  %v2218 = vpop.f32.mrb[0].mxu0
  %2219 = vmatprep.mubr.bf16.mxu0 %v220
  %2220 = vmatmul.mubr.bf16.gmra.mrb[0].mxu0 %v219
  %v2221 = vpop.f32.mrb[0].mxu0
  %v2222 = vadd.f32 0.0, %v2221
  %v2223 = vpop.f32.mrb[0].mxu0
  %v2224 = vpop.f32.mrb[0].mxu0
  %v2225 = vadd.f32 0.0, %v2224
  %v2226 = vpop.f32.mrb[0].mxu0
  %2227 = vmatprep.mubr.bf16.mxu0 %v222
  %2228 = vmatmul.mubr.bf16.gmra.mrb[0].mxu0 %v221
  %v2229 = vpop.f32.mrb[0].mxu0
  %v2230 = vadd.f32 0.0, %v2229
  %v2231 = vpop.f32.mrb[0].mxu0
  %v2232 = vpop.f32.mrb[0].mxu0
  %v2233 = vadd.f32 0.0, %v2232
  %v2234 = vpop.f32.mrb[0].mxu0
  %2235 = vmatprep.mubr.bf16.mxu0 %v224
  %2236 = vmatmul.mubr.bf16.gmra.mrb[0].mxu0 %v223
  %v2237 = vpop.f32.mrb[0].mxu0
  %v2238 = vadd.f32 0.0, %v2237
  %v2239 = vpop.f32.mrb[0].mxu0
  %v2240 = vpop.f32.mrb[0].mxu0
  %v2241 = vadd.f32 0.0, %v2240
  %v2242 = vpop.f32.mrb[0].mxu0
  %2243 = vmatprep.mubr.bf16.mxu0 %v226
  %2244 = vmatmul.mubr.bf16.gmra.mrb[0].mxu0 %v225
  %v2245 = vpop.f32.mrb[0].mxu0
  %v2246 = vadd.f32 0.0, %v2245
  %v2247 = vpop.f32.mrb[0].mxu0
  %v2248 = vpop.f32.mrb[0].mxu0
  %v2249 = vadd.f32 0.0, %v2248
  %v2250 = vpop.f32.mrb[0].mxu0
  %2251 = vmatprep.mubr.bf16.mxu0 %v228
  %2252 = vmatmul.mubr.bf16.gmra.mrb[0].mxu0 %v227
  %v2253 = vpop.f32.mrb[0].mxu0
  %v2254 = vadd.f32 0.0, %v2253
  %v2255 = vpop.f32.mrb[0].mxu0
  %v2256 = vpop.f32.mrb[0].mxu0
  %v2257 = vadd.f32 0.0, %v2256
  %v2258 = vpop.f32.mrb[0].mxu0
  %2259 = vmatprep.mubr.bf16.mxu0 %v230
  %2260 = vmatmul.mubr.bf16.gmra.mrb[0].mxu0 %v229
  %v2261 = vpop.f32.mrb[0].mxu0
  %v2262 = vadd.f32 0.0, %v2261
  %v2263 = vpop.f32.mrb[0].mxu0
  %v2264 = vpop.f32.mrb[0].mxu0
  %v2265 = vadd.f32 0.0, %v2264
  %v2266 = vpop.f32.mrb[0].mxu0
  %2267 = vdwg.mxu0
  %v2268 = vld [vmem:[%s8] sm:$0xf]
  %v2269 = vld [vmem:[%s8 + $0x4] sm:$0xf]
  %v2270 = vld [vmem:[%s8 + $0x8] sm:$0xf]
  %v2271 = vld [vmem:[%s8 + $0xc] sm:$0xf]
  %v2272 = vld [vmem:[%s8 + $0x10] sm:$0xf]
  %v2273 = vld [vmem:[%s8 + $0x14] sm:$0xf]
  %v2274 = vld [vmem:[%s8 + $0x18] sm:$0xf]
  %v2275 = vld [vmem:[%s8 + $0x1c] sm:$0xf]
  %v2276 = vld [vmem:[%s8 + $0x20] sm:$0xf]
  %v2277 = vld [vmem:[%s8 + $0x24] sm:$0xf]
  %v2278 = vld [vmem:[%s8 + $0x28] sm:$0xf]
  %v2279 = vld [vmem:[%s8 + $0x2c] sm:$0xf]
  %v2280 = vld [vmem:[%s8 + $0x30] sm:$0xf]
  %v2281 = vld [vmem:[%s8 + $0x34] sm:$0xf]
  %v2282 = vld [vmem:[%s8 + $0x38] sm:$0xf]
  %v2283 = vld [vmem:[%s8 + $0x3c] sm:$0xf]
  %v2284 = vpack.c.bf16 %v2145, %v2142
  %v2285 = vpack.c.bf16 %v2153, %v2150
  %v2286 = vpack.c.bf16 %v2161, %v2158
  %v2287 = vpack.c.bf16 %v2169, %v2166
  %v2288 = vpack.c.bf16 %v2177, %v2174
  %v2289 = vpack.c.bf16 %v2185, %v2182
  %v2290 = vpack.c.bf16 %v2193, %v2190
  %v2291 = vpack.c.bf16 %v2201, %v2198
  %v2292 = vpack.c.bf16 %v2209, %v2206
  %v2293 = vpack.c.bf16 %v2217, %v2214
  %v2294 = vpack.c.bf16 %v2225, %v2222
  %v2295 = vpack.c.bf16 %v2233, %v2230
  %v2296 = vpack.c.bf16 %v2241, %v2238
  %v2297 = vpack.c.bf16 %v2249, %v2246
  %v2298 = vpack.c.bf16 %v2257, %v2254
  %v2299 = vpack.c.bf16 %v2265, %v2262
  %v2300 = vld [vmem:[%s9] sm:$0xf]
  %v2301 = vld [vmem:[%s9 + $0x4] sm:$0xf]
  %v2302 = vld [vmem:[%s9 + $0x8] sm:$0xf]
  %v2303 = vld [vmem:[%s9 + $0xc] sm:$0xf]
  %v2304 = vld [vmem:[%s9 + $0x10] sm:$0xf]
  %v2305 = vld [vmem:[%s9 + $0x14] sm:$0xf]
  %v2306 = vld [vmem:[%s9 + $0x18] sm:$0xf]
  %v2307 = vld [vmem:[%s9 + $0x1c] sm:$0xf]
  %v2308 = vld [vmem:[%s9 + $0x20] sm:$0xf]
  %v2309 = vld [vmem:[%s9 + $0x24] sm:$0xf]
  %v2310 = vld [vmem:[%s9 + $0x28] sm:$0xf]
  %v2311 = vld [vmem:[%s9 + $0x2c] sm:$0xf]
  %v2312 = vld [vmem:[%s9 + $0x30] sm:$0xf]
  %v2313 = vld [vmem:[%s9 + $0x34] sm:$0xf]
  %v2314 = vld [vmem:[%s9 + $0x38] sm:$0xf]
  %v2315 = vld [vmem:[%s9 + $0x3c] sm:$0xf]
  %v2332 = vunpack.c.l.b16 %v2300
  %v2333 = vunpack.c.l.b16 %v2301
  %v2334 = vunpack.c.l.b16 %v2302
  %v2335 = vunpack.c.l.b16 %v2303
  %v2336 = vunpack.c.l.b16 %v2304
  %v2337 = vunpack.c.l.b16 %v2305
  %v2338 = vunpack.c.l.b16 %v2306
  %v2339 = vunpack.c.l.b16 %v2307
  %v2340 = vunpack.c.l.b16 %v2308
  %v2341 = vunpack.c.l.b16 %v2309
  %v2342 = vunpack.c.l.b16 %v2310
  %v2343 = vunpack.c.l.b16 %v2311
  %v2344 = vunpack.c.l.b16 %v2312
  %v2345 = vunpack.c.l.b16 %v2313
  %v2346 = vunpack.c.l.b16 %v2314
  %v2347 = vunpack.c.l.b16 %v2315
  %v2348 = vpack.c.b16 %v2333, %v2332
  %v2349 = vpack.c.b16 %v2335, %v2334
  %v2350 = vpack.c.b16 %v2337, %v2336
  %v2351 = vpack.c.b16 %v2339, %v2338
  %v2352 = vpack.c.b16 %v2341, %v2340
  %v2353 = vpack.c.b16 %v2343, %v2342
  %v2354 = vpack.c.b16 %v2345, %v2344
  %v2355 = vpack.c.b16 %v2347, %v2346
  %2364 = vmatprep.subr.bf16.mxu0 0
  %2365 = vmatpush1.bf16.msra.mxu0 %v2348
  %2366 = vmatprep.subr.bf16.mxu0 0
  %2367 = vmatpush1.bf16.msra.mxu0 %v2349
  %2368 = vmatprep.subr.bf16.mxu0 0
  %2369 = vmatpush1.bf16.msra.mxu0 %v2350
  %2370 = vmatprep.subr.bf16.mxu0 0
  %2371 = vmatpush1.bf16.msra.mxu0 %v2351
  %2372 = vmatprep.subr.bf16.mxu0 0
  %2373 = vmatpush1.bf16.msra.mxu0 %v2352
  %2374 = vmatprep.subr.bf16.mxu0 0
  %2375 = vmatpush1.bf16.msra.mxu0 %v2353
  %2376 = vmatprep.subr.bf16.mxu0 0
  %2377 = vmatpush1.bf16.msra.mxu0 %v2354
  %2378 = vmatprep.subr.bf16.mxu0 0
  %2379 = vmatpush1.bf16.msra.mxu0 %v2355
  %2380 = vmatprep.subr.bf16.mxu0 0
  %2381 = vmatpush1.bf16.msra.mxu0 0
  %2382 = vmatprep.subr.bf16.mxu0 0
  %2383 = vmatpush1.bf16.msra.mxu0 0
  %2384 = vmatprep.subr.bf16.mxu0 0
  %2385 = vmatpush1.bf16.msra.mxu0 0
  %2386 = vmatprep.subr.bf16.mxu0 0
  %2387 = vmatpush1.bf16.msra.mxu0 0
  %2388 = vmatprep.subr.bf16.mxu0 0
  %2389 = vmatpush1.bf16.msra.mxu0 0
  %2390 = vmatprep.subr.bf16.mxu0 0
  %2391 = vmatpush1.bf16.msra.mxu0 0
  %2392 = vmatprep.subr.bf16.mxu0 0
  %2393 = vmatpush1.bf16.msra.mxu0 0
  %2394 = vmatprep.subr.bf16.mxu0 0
  %2395 = vmatpush1.bf16.msra.mxu0 0
  %2396 = vmatprep.mubr.bf16.mxu0 0
  %2397 = vmatmul.mubr.bf16.gmra.mrb[0].mxu0 %v2284
  %v2398 = vpop.f32.mrb[0].mxu0
  %v2399 = vadd.f32 0.0, %v2398
  %v2400 = vpop.f32.mrb[0].mxu0
  %v2401 = vpop.f32.mrb[0].mxu0
  %v2402 = vadd.f32 0.0, %v2401
  %v2403 = vpop.f32.mrb[0].mxu0
  %2404 = vmatprep.mubr.bf16.mxu0 0
  %2405 = vmatmul.mubr.bf16.gmra.mrb[0].mxu0 %v2285
  %v2406 = vpop.f32.mrb[0].mxu0
  %v2407 = vadd.f32 0.0, %v2406
  %v2408 = vpop.f32.mrb[0].mxu0
  %v2409 = vpop.f32.mrb[0].mxu0
  %v2410 = vadd.f32 0.0, %v2409
  %v2411 = vpop.f32.mrb[0].mxu0
  %2412 = vmatprep.mubr.bf16.mxu0 0
  %2413 = vmatmul.mubr.bf16.gmra.mrb[0].mxu0 %v2286
  %v2414 = vpop.f32.mrb[0].mxu0
  %v2415 = vadd.f32 0.0, %v2414
  %v2416 = vpop.f32.mrb[0].mxu0
  %v2417 = vpop.f32.mrb[0].mxu0
  %v2418 = vadd.f32 0.0, %v2417
  %v2419 = vpop.f32.mrb[0].mxu0
  %2420 = vmatprep.mubr.bf16.mxu0 0
  %2421 = vmatmul.mubr.bf16.gmra.mrb[0].mxu0 %v2287
  %v2422 = vpop.f32.mrb[0].mxu0
  %v2423 = vadd.f32 0.0, %v2422
  %v2424 = vpop.f32.mrb[0].mxu0
  %v2425 = vpop.f32.mrb[0].mxu0
  %v2426 = vadd.f32 0.0, %v2425
  %v2427 = vpop.f32.mrb[0].mxu0
  %2428 = vmatprep.mubr.bf16.mxu0 0
  %2429 = vmatmul.mubr.bf16.gmra.mrb[0].mxu0 %v2288
  %v2430 = vpop.f32.mrb[0].mxu0
  %v2431 = vadd.f32 0.0, %v2430
  %v2432 = vpop.f32.mrb[0].mxu0
  %v2433 = vpop.f32.mrb[0].mxu0
  %v2434 = vadd.f32 0.0, %v2433
  %v2435 = vpop.f32.mrb[0].mxu0
  %2436 = vmatprep.mubr.bf16.mxu0 0
  %2437 = vmatmul.mubr.bf16.gmra.mrb[0].mxu0 %v2289
  %v2438 = vpop.f32.mrb[0].mxu0
  %v2439 = vadd.f32 0.0, %v2438
  %v2440 = vpop.f32.mrb[0].mxu0
  %v2441 = vpop.f32.mrb[0].mxu0
  %v2442 = vadd.f32 0.0, %v2441
  %v2443 = vpop.f32.mrb[0].mxu0
  %2444 = vmatprep.mubr.bf16.mxu0 0
  %2445 = vmatmul.mubr.bf16.gmra.mrb[0].mxu0 %v2290
  %v2446 = vpop.f32.mrb[0].mxu0
  %v2447 = vadd.f32 0.0, %v2446
  %v2448 = vpop.f32.mrb[0].mxu0
  %v2449 = vpop.f32.mrb[0].mxu0
  %v2450 = vadd.f32 0.0, %v2449
  %v2451 = vpop.f32.mrb[0].mxu0
  %2452 = vmatprep.mubr.bf16.mxu0 0
  %2453 = vmatmul.mubr.bf16.gmra.mrb[0].mxu0 %v2291
  %v2454 = vpop.f32.mrb[0].mxu0
  %v2455 = vadd.f32 0.0, %v2454
  %v2456 = vpop.f32.mrb[0].mxu0
  %v2457 = vpop.f32.mrb[0].mxu0
  %v2458 = vadd.f32 0.0, %v2457
  %v2459 = vpop.f32.mrb[0].mxu0
  %2460 = vmatprep.mubr.bf16.mxu0 0
  %2461 = vmatmul.mubr.bf16.gmra.mrb[0].mxu0 %v2292
  %v2462 = vpop.f32.mrb[0].mxu0
  %v2463 = vadd.f32 0.0, %v2462
  %v2464 = vpop.f32.mrb[0].mxu0
  %v2465 = vpop.f32.mrb[0].mxu0
  %v2466 = vadd.f32 0.0, %v2465
  %v2467 = vpop.f32.mrb[0].mxu0
  %2468 = vmatprep.mubr.bf16.mxu0 0
  %2469 = vmatmul.mubr.bf16.gmra.mrb[0].mxu0 %v2293
  %v2470 = vpop.f32.mrb[0].mxu0
  %v2471 = vadd.f32 0.0, %v2470
  %v2472 = vpop.f32.mrb[0].mxu0
  %v2473 = vpop.f32.mrb[0].mxu0
  %v2474 = vadd.f32 0.0, %v2473
  %v2475 = vpop.f32.mrb[0].mxu0
  %2476 = vmatprep.mubr.bf16.mxu0 0
  %2477 = vmatmul.mubr.bf16.gmra.mrb[0].mxu0 %v2294
  %v2478 = vpop.f32.mrb[0].mxu0
  %v2479 = vadd.f32 0.0, %v2478
  %v2480 = vpop.f32.mrb[0].mxu0
  %v2481 = vpop.f32.mrb[0].mxu0
  %v2482 = vadd.f32 0.0, %v2481
  %v2483 = vpop.f32.mrb[0].mxu0
  %2484 = vmatprep.mubr.bf16.mxu0 0
  %2485 = vmatmul.mubr.bf16.gmra.mrb[0].mxu0 %v2295
  %v2486 = vpop.f32.mrb[0].mxu0
  %v2487 = vadd.f32 0.0, %v2486
  %v2488 = vpop.f32.mrb[0].mxu0
  %v2489 = vpop.f32.mrb[0].mxu0
  %v2490 = vadd.f32 0.0, %v2489
  %v2491 = vpop.f32.mrb[0].mxu0
  %2492 = vmatprep.mubr.bf16.mxu0 0
  %2493 = vmatmul.mubr.bf16.gmra.mrb[0].mxu0 %v2296
  %v2494 = vpop.f32.mrb[0].mxu0
  %v2495 = vadd.f32 0.0, %v2494
  %v2496 = vpop.f32.mrb[0].mxu0
  %v2497 = vpop.f32.mrb[0].mxu0
  %v2498 = vadd.f32 0.0, %v2497
  %v2499 = vpop.f32.mrb[0].mxu0
  %2500 = vmatprep.mubr.bf16.mxu0 0
  %2501 = vmatmul.mubr.bf16.gmra.mrb[0].mxu0 %v2297
  %v2502 = vpop.f32.mrb[0].mxu0
  %v2503 = vadd.f32 0.0, %v2502
  %v2504 = vpop.f32.mrb[0].mxu0
  %v2505 = vpop.f32.mrb[0].mxu0
  %v2506 = vadd.f32 0.0, %v2505
  %v2507 = vpop.f32.mrb[0].mxu0
  %2508 = vmatprep.mubr.bf16.mxu0 0
  %2509 = vmatmul.mubr.bf16.gmra.mrb[0].mxu0 %v2298
  %v2510 = vpop.f32.mrb[0].mxu0
  %v2511 = vadd.f32 0.0, %v2510
  %v2512 = vpop.f32.mrb[0].mxu0
  %v2513 = vpop.f32.mrb[0].mxu0
  %v2514 = vadd.f32 0.0, %v2513
  %v2515 = vpop.f32.mrb[0].mxu0
  %2516 = vmatprep.mubr.bf16.mxu0 0
  %2517 = vmatmul.mubr.bf16.gmra.mrb[0].mxu0 %v2299
  %v2518 = vpop.f32.mrb[0].mxu0
  %v2519 = vadd.f32 0.0, %v2518
  %v2520 = vpop.f32.mrb[0].mxu0
  %v2521 = vpop.f32.mrb[0].mxu0
  %v2522 = vadd.f32 0.0, %v2521
  %v2523 = vpop.f32.mrb[0].mxu0
  %2524 = vdwg.mxu0
  %v2541 = vunpack.c.l.b16 %v2268
  %v2542 = vunpack.c.l.b16 %v2269
  %v2543 = vunpack.c.l.b16 %v2270
  %v2544 = vunpack.c.l.b16 %v2271
  %v2545 = vunpack.c.l.b16 %v2272
  %v2546 = vunpack.c.l.b16 %v2273
  %v2547 = vunpack.c.l.b16 %v2274
  %v2548 = vunpack.c.l.b16 %v2275
  %v2549 = vunpack.c.l.b16 %v2276
  %v2550 = vunpack.c.l.b16 %v2277
  %v2551 = vunpack.c.l.b16 %v2278
  %v2552 = vunpack.c.l.b16 %v2279
  %v2553 = vunpack.c.l.b16 %v2280
  %v2554 = vunpack.c.l.b16 %v2281
  %v2555 = vunpack.c.l.b16 %v2282
  %v2556 = vunpack.c.l.b16 %v2283
  %v2557 = vpack.c.b16 %v2542, %v2541
  %v2558 = vpack.c.b16 %v2544, %v2543
  %v2559 = vpack.c.b16 %v2546, %v2545
  %v2560 = vpack.c.b16 %v2548, %v2547
  %v2561 = vpack.c.b16 %v2550, %v2549
  %v2562 = vpack.c.b16 %v2552, %v2551
  %v2563 = vpack.c.b16 %v2554, %v2553
  %v2564 = vpack.c.b16 %v2556, %v2555
  %2573 = vmatprep.subr.bf16.mxu0 0
  %2574 = vmatpush1.bf16.msra.mxu0 %v2557
  %2575 = vmatprep.subr.bf16.mxu0 0
  %2576 = vmatpush1.bf16.msra.mxu0 %v2558
  %2577 = vmatprep.subr.bf16.mxu0 0
  %2578 = vmatpush1.bf16.msra.mxu0 %v2559
  %2579 = vmatprep.subr.bf16.mxu0 0
  %2580 = vmatpush1.bf16.msra.mxu0 %v2560
  %2581 = vmatprep.subr.bf16.mxu0 0
  %2582 = vmatpush1.bf16.msra.mxu0 %v2561
  %2583 = vmatprep.subr.bf16.mxu0 0
  %2584 = vmatpush1.bf16.msra.mxu0 %v2562
  %2585 = vmatprep.subr.bf16.mxu0 0
  %2586 = vmatpush1.bf16.msra.mxu0 %v2563
  %2587 = vmatprep.subr.bf16.mxu0 0
  %2588 = vmatpush1.bf16.msra.mxu0 %v2564
  %2589 = vmatprep.subr.bf16.mxu0 0
  %2590 = vmatpush1.bf16.msra.mxu0 0
  %2591 = vmatprep.subr.bf16.mxu0 0
  %2592 = vmatpush1.bf16.msra.mxu0 0
  %2593 = vmatprep.subr.bf16.mxu0 0
  %2594 = vmatpush1.bf16.msra.mxu0 0
  %2595 = vmatprep.subr.bf16.mxu0 0
  %2596 = vmatpush1.bf16.msra.mxu0 0
  %2597 = vmatprep.subr.bf16.mxu0 0
  %2598 = vmatpush1.bf16.msra.mxu0 0
  %2599 = vmatprep.subr.bf16.mxu0 0
  %2600 = vmatpush1.bf16.msra.mxu0 0
  %2601 = vmatprep.subr.bf16.mxu0 0
  %2602 = vmatpush1.bf16.msra.mxu0 0
  %2603 = vmatprep.subr.bf16.mxu0 0
  %2604 = vmatpush1.bf16.msra.mxu0 0
  %2605 = vmatprep.mubr.bf16.mxu0 0
  %2606 = vmatmul.mubr.bf16.gmra.mrb[0].mxu0 %v2091
  %v2607 = vpop.f32.mrb[0].mxu0
  %v2608 = vadd.f32 %v2399, %v2607
  %v2609 = vpop.f32.mrb[0].mxu0
  %v2610 = vpop.f32.mrb[0].mxu0
  %v2611 = vadd.f32 %v2402, %v2610
  %v2612 = vpop.f32.mrb[0].mxu0
  %2613 = vmatprep.mubr.bf16.mxu0 0
  %2614 = vmatmul.mubr.bf16.gmra.mrb[0].mxu0 %v2092
  %v2615 = vpop.f32.mrb[0].mxu0
  %v2616 = vadd.f32 %v2407, %v2615
  %v2617 = vpop.f32.mrb[0].mxu0
  %v2618 = vpop.f32.mrb[0].mxu0
  %v2619 = vadd.f32 %v2410, %v2618
  %v2620 = vpop.f32.mrb[0].mxu0
  %2621 = vmatprep.mubr.bf16.mxu0 0
  %2622 = vmatmul.mubr.bf16.gmra.mrb[0].mxu0 %v2093
  %v2623 = vpop.f32.mrb[0].mxu0
  %v2624 = vadd.f32 %v2415, %v2623
  %v2625 = vpop.f32.mrb[0].mxu0
  %v2626 = vpop.f32.mrb[0].mxu0
  %v2627 = vadd.f32 %v2418, %v2626
  %v2628 = vpop.f32.mrb[0].mxu0
  %2629 = vmatprep.mubr.bf16.mxu0 0
  %2630 = vmatmul.mubr.bf16.gmra.mrb[0].mxu0 %v2094
  %v2631 = vpop.f32.mrb[0].mxu0
  %v2632 = vadd.f32 %v2423, %v2631
  %v2633 = vpop.f32.mrb[0].mxu0
  %v2634 = vpop.f32.mrb[0].mxu0
  %v2635 = vadd.f32 %v2426, %v2634
  %v2636 = vpop.f32.mrb[0].mxu0
  %2637 = vmatprep.mubr.bf16.mxu0 0
  %2638 = vmatmul.mubr.bf16.gmra.mrb[0].mxu0 %v2095
  %v2639 = vpop.f32.mrb[0].mxu0
  %v2640 = vadd.f32 %v2431, %v2639
  %v2641 = vpop.f32.mrb[0].mxu0
  %v2642 = vpop.f32.mrb[0].mxu0
  %v2643 = vadd.f32 %v2434, %v2642
  %v2644 = vpop.f32.mrb[0].mxu0
  %2645 = vmatprep.mubr.bf16.mxu0 0
  %2646 = vmatmul.mubr.bf16.gmra.mrb[0].mxu0 %v2096
  %v2647 = vpop.f32.mrb[0].mxu0
  %v2648 = vadd.f32 %v2439, %v2647
  %v2649 = vpop.f32.mrb[0].mxu0
  %v2650 = vpop.f32.mrb[0].mxu0
  %v2651 = vadd.f32 %v2442, %v2650
  %v2652 = vpop.f32.mrb[0].mxu0
  %2653 = vmatprep.mubr.bf16.mxu0 0
  %2654 = vmatmul.mubr.bf16.gmra.mrb[0].mxu0 %v2097
  %v2655 = vpop.f32.mrb[0].mxu0
  %v2656 = vadd.f32 %v2447, %v2655
  %v2657 = vpop.f32.mrb[0].mxu0
  %v2658 = vpop.f32.mrb[0].mxu0
  %v2659 = vadd.f32 %v2450, %v2658
  %v2660 = vpop.f32.mrb[0].mxu0
  %2661 = vmatprep.mubr.bf16.mxu0 0
  %2662 = vmatmul.mubr.bf16.gmra.mrb[0].mxu0 %v2098
  %v2663 = vpop.f32.mrb[0].mxu0
  %v2664 = vadd.f32 %v2455, %v2663
  %v2665 = vpop.f32.mrb[0].mxu0
  %v2666 = vpop.f32.mrb[0].mxu0
  %v2667 = vadd.f32 %v2458, %v2666
  %v2668 = vpop.f32.mrb[0].mxu0
  %2669 = vmatprep.mubr.bf16.mxu0 0
  %2670 = vmatmul.mubr.bf16.gmra.mrb[0].mxu0 %v2099
  %v2671 = vpop.f32.mrb[0].mxu0
  %v2672 = vadd.f32 %v2463, %v2671
  %v2673 = vpop.f32.mrb[0].mxu0
  %v2674 = vpop.f32.mrb[0].mxu0
  %v2675 = vadd.f32 %v2466, %v2674
  %v2676 = vpop.f32.mrb[0].mxu0
  %2677 = vmatprep.mubr.bf16.mxu0 0
  %2678 = vmatmul.mubr.bf16.gmra.mrb[0].mxu0 %v2100
  %v2679 = vpop.f32.mrb[0].mxu0
  %v2680 = vadd.f32 %v2471, %v2679
  %v2681 = vpop.f32.mrb[0].mxu0
  %v2682 = vpop.f32.mrb[0].mxu0
  %v2683 = vadd.f32 %v2474, %v2682
  %v2684 = vpop.f32.mrb[0].mxu0
  %2685 = vmatprep.mubr.bf16.mxu0 0
  %2686 = vmatmul.mubr.bf16.gmra.mrb[0].mxu0 %v2101
  %v2687 = vpop.f32.mrb[0].mxu0
  %v2688 = vadd.f32 %v2479, %v2687
  %v2689 = vpop.f32.mrb[0].mxu0
  %v2690 = vpop.f32.mrb[0].mxu0
  %v2691 = vadd.f32 %v2482, %v2690
  %v2692 = vpop.f32.mrb[0].mxu0
  %2693 = vmatprep.mubr.bf16.mxu0 0
  %2694 = vmatmul.mubr.bf16.gmra.mrb[0].mxu0 %v2102
  %v2695 = vpop.f32.mrb[0].mxu0
  %v2696 = vadd.f32 %v2487, %v2695
  %v2697 = vpop.f32.mrb[0].mxu0
  %v2698 = vpop.f32.mrb[0].mxu0
  %v2699 = vadd.f32 %v2490, %v2698
  %v2700 = vpop.f32.mrb[0].mxu0
  %2701 = vmatprep.mubr.bf16.mxu0 0
  %2702 = vmatmul.mubr.bf16.gmra.mrb[0].mxu0 %v2103
  %v2703 = vpop.f32.mrb[0].mxu0
  %v2704 = vadd.f32 %v2495, %v2703
  %v2705 = vpop.f32.mrb[0].mxu0
  %v2706 = vpop.f32.mrb[0].mxu0
  %v2707 = vadd.f32 %v2498, %v2706
  %v2708 = vpop.f32.mrb[0].mxu0
  %2709 = vmatprep.mubr.bf16.mxu0 0
  %2710 = vmatmul.mubr.bf16.gmra.mrb[0].mxu0 %v2104
  %v2711 = vpop.f32.mrb[0].mxu0
  %v2712 = vadd.f32 %v2503, %v2711
  %v2713 = vpop.f32.mrb[0].mxu0
  %v2714 = vpop.f32.mrb[0].mxu0
  %v2715 = vadd.f32 %v2506, %v2714
  %v2716 = vpop.f32.mrb[0].mxu0
  %2717 = vmatprep.mubr.bf16.mxu0 0
  %2718 = vmatmul.mubr.bf16.gmra.mrb[0].mxu0 %v2105
  %v2719 = vpop.f32.mrb[0].mxu0
  %v2720 = vadd.f32 %v2511, %v2719
  %v2721 = vpop.f32.mrb[0].mxu0
  %v2722 = vpop.f32.mrb[0].mxu0
  %v2723 = vadd.f32 %v2514, %v2722
  %v2724 = vpop.f32.mrb[0].mxu0
  %2725 = vmatprep.mubr.bf16.mxu0 0
  %2726 = vmatmul.mubr.bf16.gmra.mrb[0].mxu0 %v2106
  %v2727 = vpop.f32.mrb[0].mxu0
  %v2728 = vadd.f32 %v2519, %v2727
  %v2729 = vpop.f32.mrb[0].mxu0
  %v2730 = vpop.f32.mrb[0].mxu0
  %v2731 = vadd.f32 %v2522, %v2730
  %v2732 = vpop.f32.mrb[0].mxu0
  %2733 = vdwg.mxu0
  %v2734 = vld [vmem:[%s10] sm:$0x1]
  %v2736 = vlaneseq
  %v2737 = vshrl.u32 %v2736, 7
  %v2738 = vsub.s32 0, %v2737
  %v2739 = vrot.slane %v2734, %v2738
  %v2741 = vadd.f32 %v2608, %v2739
  %v2742 = vadd.f32 %v2611, %v2739
  %v2743 = vadd.f32 %v2616, %v2739
  %v2744 = vadd.f32 %v2619, %v2739
  %v2745 = vadd.f32 %v2624, %v2739
  %v2746 = vadd.f32 %v2627, %v2739
  %v2747 = vadd.f32 %v2632, %v2739
  %v2748 = vadd.f32 %v2635, %v2739
  %v2749 = vadd.f32 %v2640, %v2739
  %v2750 = vadd.f32 %v2643, %v2739
  %v2751 = vadd.f32 %v2648, %v2739
  %v2752 = vadd.f32 %v2651, %v2739
  %v2753 = vadd.f32 %v2656, %v2739
  %v2754 = vadd.f32 %v2659, %v2739
  %v2755 = vadd.f32 %v2664, %v2739
  %v2756 = vadd.f32 %v2667, %v2739
  %v2757 = vadd.f32 %v2672, %v2739
  %v2758 = vadd.f32 %v2675, %v2739
  %v2759 = vadd.f32 %v2680, %v2739
  %v2760 = vadd.f32 %v2683, %v2739
  %v2761 = vadd.f32 %v2688, %v2739
  %v2762 = vadd.f32 %v2691, %v2739
  %v2763 = vadd.f32 %v2696, %v2739
  %v2764 = vadd.f32 %v2699, %v2739
  %v2765 = vadd.f32 %v2704, %v2739
  %v2766 = vadd.f32 %v2707, %v2739
  %v2767 = vadd.f32 %v2712, %v2739
  %v2768 = vadd.f32 %v2715, %v2739
  %v2769 = vadd.f32 %v2720, %v2739
  %v2770 = vadd.f32 %v2723, %v2739
  %v2771 = vadd.f32 %v2728, %v2739
  %v2772 = vadd.f32 %v2731, %v2739
  %v2773 = vxor.u32 %v2741, 2147483648
  %v2774 = vxor.u32 %v2742, 2147483648
  %v2775 = vxor.u32 %v2743, 2147483648
  %v2776 = vxor.u32 %v2744, 2147483648
  %v2777 = vxor.u32 %v2745, 2147483648
  %v2778 = vxor.u32 %v2746, 2147483648
  %v2779 = vxor.u32 %v2747, 2147483648
  %v2780 = vxor.u32 %v2748, 2147483648
  %v2781 = vxor.u32 %v2749, 2147483648
  %v2782 = vxor.u32 %v2750, 2147483648
  %v2783 = vxor.u32 %v2751, 2147483648
  %v2784 = vxor.u32 %v2752, 2147483648
  %v2785 = vxor.u32 %v2753, 2147483648
  %v2786 = vxor.u32 %v2754, 2147483648
  %v2787 = vxor.u32 %v2755, 2147483648
  %v2788 = vxor.u32 %v2756, 2147483648
  %v2789 = vxor.u32 %v2757, 2147483648
  %v2790 = vxor.u32 %v2758, 2147483648
  %v2791 = vxor.u32 %v2759, 2147483648
  %v2792 = vxor.u32 %v2760, 2147483648
  %v2793 = vxor.u32 %v2761, 2147483648
  %v2794 = vxor.u32 %v2762, 2147483648
  %v2795 = vxor.u32 %v2763, 2147483648
  %v2796 = vxor.u32 %v2764, 2147483648
  %v2797 = vxor.u32 %v2765, 2147483648
  %v2798 = vxor.u32 %v2766, 2147483648
  %v2799 = vxor.u32 %v2767, 2147483648
  %v2800 = vxor.u32 %v2768, 2147483648
  %v2801 = vxor.u32 %v2769, 2147483648
  %v2802 = vxor.u32 %v2770, 2147483648
  %v2803 = vxor.u32 %v2771, 2147483648
  %v2804 = vxor.u32 %v2772, 2147483648
  %v2805 = vmul.f32 %v2773, 1.442695
  %v2806 = vpow.pop %v2805
  %v2807 = vmul.f32 %v2774, 1.442695
  %v2808 = vpow.pop %v2807
  %v2809 = vmul.f32 %v2775, 1.442695
  %v2810 = vpow.pop %v2809
  %v2811 = vmul.f32 %v2776, 1.442695
  %v2812 = vpow.pop %v2811
  %v2813 = vmul.f32 %v2777, 1.442695
  %v2814 = vpow.pop %v2813
  %v2815 = vmul.f32 %v2778, 1.442695
  %v2816 = vpow.pop %v2815
  %v2817 = vmul.f32 %v2779, 1.442695
  %v2818 = vpow.pop %v2817
  %v2819 = vmul.f32 %v2780, 1.442695
  %v2820 = vpow.pop %v2819
  %v2821 = vmul.f32 %v2781, 1.442695
  %v2822 = vpow.pop %v2821
  %v2823 = vmul.f32 %v2782, 1.442695
  %v2824 = vpow.pop %v2823
  %v2825 = vmul.f32 %v2783, 1.442695
  %v2826 = vpow.pop %v2825
  %v2827 = vmul.f32 %v2784, 1.442695
  %v2828 = vpow.pop %v2827
  %v2829 = vmul.f32 %v2785, 1.442695
  %v2830 = vpow.pop %v2829
  %v2831 = vmul.f32 %v2786, 1.442695
  %v2832 = vpow.pop %v2831
  %v2833 = vmul.f32 %v2787, 1.442695
  %v2834 = vpow.pop %v2833
  %v2835 = vmul.f32 %v2788, 1.442695
  %v2836 = vpow.pop %v2835
  %v2837 = vmul.f32 %v2789, 1.442695
  %v2838 = vpow.pop %v2837
  %v2839 = vmul.f32 %v2790, 1.442695
  %v2840 = vpow.pop %v2839
  %v2841 = vmul.f32 %v2791, 1.442695
  %v2842 = vpow.pop %v2841
  %v2843 = vmul.f32 %v2792, 1.442695
  %v2844 = vpow.pop %v2843
  %v2845 = vmul.f32 %v2793, 1.442695
  %v2846 = vpow.pop %v2845
  %v2847 = vmul.f32 %v2794, 1.442695
  %v2848 = vpow.pop %v2847
  %v2849 = vmul.f32 %v2795, 1.442695
  %v2850 = vpow.pop %v2849
  %v2851 = vmul.f32 %v2796, 1.442695
  %v2852 = vpow.pop %v2851
  %v2853 = vmul.f32 %v2797, 1.442695
  %v2854 = vpow.pop %v2853
  %v2855 = vmul.f32 %v2798, 1.442695
  %v2856 = vpow.pop %v2855
  %v2857 = vmul.f32 %v2799, 1.442695
  %v2858 = vpow.pop %v2857
  %v2859 = vmul.f32 %v2800, 1.442695
  %v2860 = vpow.pop %v2859
  %v2861 = vmul.f32 %v2801, 1.442695
  %v2862 = vpow.pop %v2861
  %v2863 = vmul.f32 %v2802, 1.442695
  %v2864 = vpow.pop %v2863
  %v2865 = vmul.f32 %v2803, 1.442695
  %v2866 = vpow.pop %v2865
  %v2867 = vmul.f32 %v2804, 1.442695
  %v2868 = vpow.pop %v2867
  %v2869 = vadd.f32 %v2806, 1.0
  %v2870 = vadd.f32 %v2808, 1.0
  %v2871 = vadd.f32 %v2810, 1.0
  %v2872 = vadd.f32 %v2812, 1.0
  %v2873 = vadd.f32 %v2814, 1.0
  %v2874 = vadd.f32 %v2816, 1.0
  %v2875 = vadd.f32 %v2818, 1.0
  %v2876 = vadd.f32 %v2820, 1.0
  %v2877 = vadd.f32 %v2822, 1.0
  %v2878 = vadd.f32 %v2824, 1.0
  %v2879 = vadd.f32 %v2826, 1.0
  %v2880 = vadd.f32 %v2828, 1.0
  %v2881 = vadd.f32 %v2830, 1.0
  %v2882 = vadd.f32 %v2832, 1.0
  %v2883 = vadd.f32 %v2834, 1.0
  %v2884 = vadd.f32 %v2836, 1.0
  %v2885 = vadd.f32 %v2838, 1.0
  %v2886 = vadd.f32 %v2840, 1.0
  %v2887 = vadd.f32 %v2842, 1.0
  %v2888 = vadd.f32 %v2844, 1.0
  %v2889 = vadd.f32 %v2846, 1.0
  %v2890 = vadd.f32 %v2848, 1.0
  %v2891 = vadd.f32 %v2850, 1.0
  %v2892 = vadd.f32 %v2852, 1.0
  %v2893 = vadd.f32 %v2854, 1.0
  %v2894 = vadd.f32 %v2856, 1.0
  %v2895 = vadd.f32 %v2858, 1.0
  %v2896 = vadd.f32 %v2860, 1.0
  %v2897 = vadd.f32 %v2862, 1.0
  %v2898 = vadd.f32 %v2864, 1.0
  %v2899 = vadd.f32 %v2866, 1.0
  %v2900 = vadd.f32 %v2868, 1.0
  %v2901 = vrcp.pop %v2869
  %v2902 = vmul.f32 1.0, %v2901
  %v2903 = vrcp.pop %v2870
  %v2904 = vmul.f32 1.0, %v2903
  %v2905 = vrcp.pop %v2871
  %v2906 = vmul.f32 1.0, %v2905
  %v2907 = vrcp.pop %v2872
  %v2908 = vmul.f32 1.0, %v2907
  %v2909 = vrcp.pop %v2873
  %v2910 = vmul.f32 1.0, %v2909
  %v2911 = vrcp.pop %v2874
  %v2912 = vmul.f32 1.0, %v2911
  %v2913 = vrcp.pop %v2875
  %v2914 = vmul.f32 1.0, %v2913
  %v2915 = vrcp.pop %v2876
  %v2916 = vmul.f32 1.0, %v2915
  %v2917 = vrcp.pop %v2877
  %v2918 = vmul.f32 1.0, %v2917
  %v2919 = vrcp.pop %v2878
  %v2920 = vmul.f32 1.0, %v2919
  %v2921 = vrcp.pop %v2879
  %v2922 = vmul.f32 1.0, %v2921
  %v2923 = vrcp.pop %v2880
  %v2924 = vmul.f32 1.0, %v2923
  %v2925 = vrcp.pop %v2881
  %v2926 = vmul.f32 1.0, %v2925
  %v2927 = vrcp.pop %v2882
  %v2928 = vmul.f32 1.0, %v2927
  %v2929 = vrcp.pop %v2883
  %v2930 = vmul.f32 1.0, %v2929
  %v2931 = vrcp.pop %v2884
  %v2932 = vmul.f32 1.0, %v2931
  %v2933 = vrcp.pop %v2885
  %v2934 = vmul.f32 1.0, %v2933
  %v2935 = vrcp.pop %v2886
  %v2936 = vmul.f32 1.0, %v2935
  %v2937 = vrcp.pop %v2887
  %v2938 = vmul.f32 1.0, %v2937
  %v2939 = vrcp.pop %v2888
  %v2940 = vmul.f32 1.0, %v2939
  %v2941 = vrcp.pop %v2889
  %v2942 = vmul.f32 1.0, %v2941
  %v2943 = vrcp.pop %v2890
  %v2944 = vmul.f32 1.0, %v2943
  %v2945 = vrcp.pop %v2891
  %v2946 = vmul.f32 1.0, %v2945
  %v2947 = vrcp.pop %v2892
  %v2948 = vmul.f32 1.0, %v2947
  %v2949 = vrcp.pop %v2893
  %v2950 = vmul.f32 1.0, %v2949
  %v2951 = vrcp.pop %v2894
  %v2952 = vmul.f32 1.0, %v2951
  %v2953 = vrcp.pop %v2895
  %v2954 = vmul.f32 1.0, %v2953
  %v2955 = vrcp.pop %v2896
  %v2956 = vmul.f32 1.0, %v2955
  %v2957 = vrcp.pop %v2897
  %v2958 = vmul.f32 1.0, %v2957
  %v2959 = vrcp.pop %v2898
  %v2960 = vmul.f32 1.0, %v2959
  %v2961 = vrcp.pop %v2899
  %v2962 = vmul.f32 1.0, %v2961
  %v2963 = vrcp.pop %v2900
  %v2964 = vmul.f32 1.0, %v2963
  %2965 = vst [vmem:[%s11] sm:$0xff] %v2902
  %2966 = vst [vmem:[%s11 + $0x8] sm:$0xff] %v2904
  %2967 = vst [vmem:[%s11 + $0x10] sm:$0xff] %v2906
  %2968 = vst [vmem:[%s11 + $0x18] sm:$0xff] %v2908
  %2969 = vst [vmem:[%s11 + $0x20] sm:$0xff] %v2910
  %2970 = vst [vmem:[%s11 + $0x28] sm:$0xff] %v2912
  %2971 = vst [vmem:[%s11 + $0x30] sm:$0xff] %v2914
  %2972 = vst [vmem:[%s11 + $0x38] sm:$0xff] %v2916
  %2973 = vst [vmem:[%s11 + $0x40] sm:$0xff] %v2918
  %2974 = vst [vmem:[%s11 + $0x48] sm:$0xff] %v2920
  %2975 = vst [vmem:[%s11 + $0x50] sm:$0xff] %v2922
  %2976 = vst [vmem:[%s11 + $0x58] sm:$0xff] %v2924
  %2977 = vst [vmem:[%s11 + $0x60] sm:$0xff] %v2926
  %2978 = vst [vmem:[%s11 + $0x68] sm:$0xff] %v2928
  %2979 = vst [vmem:[%s11 + $0x70] sm:$0xff] %v2930
  %2980 = vst [vmem:[%s11 + $0x78] sm:$0xff] %v2932
  %2981 = vst [vmem:[%s11 + $0x80] sm:$0xff] %v2934
  %2982 = vst [vmem:[%s11 + $0x88] sm:$0xff] %v2936
  %2983 = vst [vmem:[%s11 + $0x90] sm:$0xff] %v2938
  %2984 = vst [vmem:[%s11 + $0x98] sm:$0xff] %v2940
  %2985 = vst [vmem:[%s11 + $0xa0] sm:$0xff] %v2942
  %2986 = vst [vmem:[%s11 + $0xa8] sm:$0xff] %v2944
  %2987 = vst [vmem:[%s11 + $0xb0] sm:$0xff] %v2946
  %2988 = vst [vmem:[%s11 + $0xb8] sm:$0xff] %v2948
  %2989 = vst [vmem:[%s11 + $0xc0] sm:$0xff] %v2950
  %2990 = vst [vmem:[%s11 + $0xc8] sm:$0xff] %v2952
  %2991 = vst [vmem:[%s11 + $0xd0] sm:$0xff] %v2954
  %2992 = vst [vmem:[%s11 + $0xd8] sm:$0xff] %v2956
  %2993 = vst [vmem:[%s11 + $0xe0] sm:$0xff] %v2958
  %2994 = vst [vmem:[%s11 + $0xe8] sm:$0xff] %v2960
  %2995 = vst [vmem:[%s11 + $0xf0] sm:$0xff] %v2962
  %2996 = vst [vmem:[%s11 + $0xf8] sm:$0xff] %v2964
  // Predicated region
  $region46: #{gcn_forward.1} parent=0 // pred_check
    _
  $region47: #{gcn_forward.1} parent=0 // pred_check_branch
    %2998 = sbr.rel (0) target = $region49
  $region48: #{gcn_forward.1} parent=0 // pred_region
    _
  $region49: #{gcn_forward.1} parent=0 // pred_fallthru
    _
  // Predicated region
  $region50: #{gcn_forward.1} parent=0 // pred_check
    _
  $region51: #{gcn_forward.1} parent=0 // pred_check_branch
    %3000 = sbr.rel (0) target = $region53
  $region52: #{gcn_forward.1} parent=0 // pred_region
    _
  $region53: #{gcn_forward.1} parent=0 // pred_fallthru
    _

</llo_original>
